<compile_context>
chip_gen: v7x
topology: tpu7x:2x2x1
jax: 0.10.0
libtpu: 0.0.40
codegen_flags: <defaults>
</compile_context>

<pallas_src>
import functools

import jax
import jax.numpy as jnp
from jax.experimental import pallas as pl
from jax.experimental.pallas import tpu as pltpu


def _silu(x):
    return x * jax.nn.sigmoid(x)


def _round_up(x, m):
    return ((x + m - 1) // m) * m


def interaction_kernel(node_cat_ref, atom_ref, force_ref,
                       src_ref, dst_ref, dir_ref, dist_ref,
                       we_ref, wq1a_ref, wq1b_ref, wq2a_ref, wq2b_ref, wu_ref,
                       ln_g_ref, ln_b_ref,
                       atom_out_ref, force_out_ref,
                       acc_ref):
    f32 = jnp.float32
    bf16 = jnp.bfloat16
    e = pl.program_id(0)
    N = node_cat_ref.shape[0]
    F = atom_ref.shape[1]
    Et = dist_ref.shape[0]

    # ---- init: zero the fused [N, 4F] scatter accumulator -------------------
    @pl.when(e == 0)
    def _init():
        acc_ref[...] = jnp.zeros_like(acc_ref)

    # ---- rebuild the one-hot gather/scatter tiles in-register ---------------
    # (edge ids streamed as [Et,1] int32; no [E,N] HBM traffic)
    node_iota = jax.lax.broadcasted_iota(jnp.int32, (Et, N), 1)
    g0 = (node_iota == src_ref[...]).astype(bf16)            # [Et, N]
    g1 = (node_iota == dst_ref[...]).astype(bf16)            # [Et, N]

    node_cat = node_cat_ref[...]                              # bf16 [N, 4F]
    mnp = node_cat[:, :F]                                     # bf16 [N, F]

    # ---- per-edge-tile invariant message ------------------------------------
    mep = jnp.dot(dist_ref[...], we_ref[...], preferred_element_type=f32)      # [Et, F]
    mnp_src = jnp.dot(g0, mnp, preferred_element_type=f32)                     # [Et, F]
    gathered = jnp.dot(g1, node_cat, preferred_element_type=f32)               # [Et, 4F]
    mnp_dst = gathered[:, :F]
    message_f32 = mep * mnp_src * mnp_dst
    message = message_f32.astype(bf16)

    # invariant parts of the equivariant messages
    q1 = jnp.dot(
        _silu(jnp.dot(message, wq1a_ref[...], preferred_element_type=f32)).astype(bf16),
        wq1b_ref[...], preferred_element_type=f32)                             # [Et, F]
    q2 = jnp.dot(
        _silu(jnp.dot(message, wq2a_ref[...], preferred_element_type=f32)).astype(bf16),
        wq2b_ref[...], preferred_element_type=f32)                             # [Et, F]

    dir_e = dir_ref[...]                                                       # f32 [Et, 3]
    payload_parts = [message]
    for k in range(3):                                                         # static unroll
        fe_k = gathered[:, (k + 1) * F:(k + 2) * F]                            # force axis k
        em_k = q1 * dir_e[:, k:k + 1] + q2 * fe_k
        payload_parts.append(em_k.astype(bf16))
    payload = jnp.concatenate(payload_parts, axis=-1)                          # bf16 [Et, 4F]

    # fused scatter-add (invariant + 3 equivariant axes): G0^T @ payload
    dn = (((0,), (0,)), ((), ()))
    acc_ref[...] += jax.lax.dot_general(g0, payload, dn,
                                        preferred_element_type=f32)            # [N, 4F]

    # ---- final step: residuals, equiv_update, layernorm, write outputs ------
    @pl.when(e == pl.num_programs(0) - 1)
    def _finalize():
        acc = acc_ref[...]                                                     # f32 [N, 4F]
        atom = atom_ref[...] + acc[:, :F]                                      # f32 [N, F]
        nf = force_ref[...] + acc[:, F:]                                       # f32 [N, 3F]
        force_out_ref[...] = nf.astype(force_out_ref.dtype)

        nf_bf = nf.astype(bf16)
        inv2 = jnp.zeros_like(atom)
        for k in range(3):                                                     # static unroll
            inv2 = inv2 + nf[:, k * F:(k + 1) * F] * jnp.dot(
                nf_bf[:, k * F:(k + 1) * F], wu_ref[...],
                preferred_element_type=f32)
        atom = atom + inv2

        # LayerNorm over features (torch default: eps=1e-5, biased variance)
        mean = jnp.mean(atom, axis=-1, keepdims=True)
        var = jnp.mean((atom - mean) ** 2, axis=-1, keepdims=True)
        atom = (atom - mean) * jax.lax.rsqrt(var + 1e-5)
        atom = atom * ln_g_ref[...] + ln_b_ref[...]
        atom_out_ref[...] = atom.astype(atom_out_ref.dtype)


def _vmem_limit_bytes():
    try:
        cap = pltpu.get_tpu_info().vmem_capacity_bytes
        # ~96 MiB on 128 MiB chips (v5e/v6e), ~48 MiB on 64 MiB chips (v7x).
        return int(min(100 * 1024 * 1024, cap * 3 // 4))
    except Exception:
        return None


def interaction_net(atom_node, force_node, dir_edge, dist_edge, edge_index, params,
                    *, e_tile=None):
    N, F = atom_node.shape
    E = dir_edge.shape[0]
    B = dist_edge.shape[1]
    bf16 = jnp.bfloat16

    # node MLP (message_nodepart) hoisted out of the kernel: tiny [N,F]x[F,F]
    # matmuls XLA can overlap with the kernel's input DMA.
    mnp = _silu(atom_node @ params["w1"] + params["b1"]) @ params["w2"] + params["b2"]

    force_flat = force_node.reshape(N, 3 * F)                                  # lane-dense
    node_cat = jnp.concatenate([mnp, force_flat], axis=-1).astype(bf16)        # [N, 4F]

    # edge tile size: multiple of 16 (bf16 sublane pack), capped at 512.
    if e_tile is None:
        e_tile = min(512, _round_up(E, 16))
    else:
        e_tile = _round_up(e_tile, 16)
    e_tile = max(16, min(e_tile, _round_up(E, 16)))
    n_tiles = pl.cdiv(E, e_tile)
    E_pad = n_tiles * e_tile

    src = edge_index[0].astype(jnp.int32)
    dst = edge_index[1].astype(jnp.int32)
    if E_pad != E:
        # padded edges: dist rows are zero -> message == 0 and both invariant
        # parts of the equivariant messages are silu(0) @ W == 0, so the
        # padded rows scatter exact zeros (regardless of the padded id 0).
        pad = E_pad - E
        src = jnp.pad(src, (0, pad))
        dst = jnp.pad(dst, (0, pad))
        dir_edge = jnp.pad(dir_edge, ((0, pad), (0, 0)))
        dist_edge = jnp.pad(dist_edge, ((0, pad), (0, 0)))
    src = src.reshape(E_pad, 1)
    dst = dst.reshape(E_pad, 1)

    atom_f32 = atom_node.astype(jnp.float32)
    force_f32 = force_flat.astype(jnp.float32)
    dir_f32 = dir_edge.astype(jnp.float32)
    dist_bf = dist_edge.astype(bf16)
    wb = {k: params[k].astype(bf16)
          for k in ("we", "wq1a", "wq1b", "wq2a", "wq2b", "wu")}
    ln_g = params["ln_g"].astype(jnp.float32)
    ln_b = params["ln_b"].astype(jnp.float32)

    def resident(shape):
        # TODO(synk): pipeline_mode=pl.Buffered(1) would avoid double-buffering
        # these constant-index blocks (mainly helps v7x's 64 MiB VMEM).
        return pl.BlockSpec(shape, lambda e: (0, 0))

    def edge_tiled(shape):
        return pl.BlockSpec(shape, lambda e: (e, 0))

    in_specs = [
        resident((N, 4 * F)),          # node_cat (bf16: mnp | force)
        resident((N, F)),              # atom (f32, finalize path)
        resident((N, 3 * F)),          # force (f32, finalize path)
        edge_tiled((e_tile, 1)),       # src ids
        edge_tiled((e_tile, 1)),       # dst ids
        edge_tiled((e_tile, 3)),       # dir
        edge_tiled((e_tile, B)),       # dist
        resident((B, F)),              # we
        resident((F, F)),              # wq1a
        resident((F, F)),              # wq1b
        resident((F, F)),              # wq2a
        resident((F, F)),              # wq2b
        resident((F, F)),              # wu
        resident((1, F)),              # ln_g
        resident((1, F)),              # ln_b
    ]
    out_specs = (resident((N, F)), resident((N, 3 * F)))

    cp_kwargs = dict(dimension_semantics=("arbitrary",))
    vmem_limit = _vmem_limit_bytes()
    if vmem_limit is not None:
        cp_kwargs["vmem_limit_bytes"] = vmem_limit

    atom_out, force_out = pl.pallas_call(
        interaction_kernel,
        out_shape=(jax.ShapeDtypeStruct((N, F), jnp.float32),
                   jax.ShapeDtypeStruct((N, 3 * F), jnp.float32)),
        grid=(n_tiles,),
        in_specs=in_specs,
        out_specs=out_specs,
        scratch_shapes=[
            pltpu.VMEM((N, 4 * F), jnp.float32),   # fused scatter accumulator
        ],
        compiler_params=pltpu.CompilerParams(**cp_kwargs),
    )(node_cat, atom_f32, force_f32, src, dst, dir_f32, dist_bf,
      wb["we"], wb["wq1a"], wb["wq1b"], wb["wq2a"], wb["wq2b"], wb["wu"],
      ln_g, ln_b)

    return atom_out, force_out.reshape(N, 3, F)


def reference_forward(atom, force, dir_e, dist, ei, p):
    """Pure-JAX f32 reference mirroring the torch forward exactly."""
    mnp = _silu(atom @ p["w1"] + p["b1"]) @ p["w2"] + p["b2"]
    mep = dist @ p["we"]
    message = mep * mnp[ei[0]] * mnp[ei[1]]
    atom = atom + jnp.zeros_like(atom).at[ei[0]].add(message)
    q1 = _silu(message @ p["wq1a"]) @ p["wq1b"]
    q2 = _silu(message @ p["wq2a"]) @ p["wq2b"]
    em1 = q1[:, None, :] * dir_e[:, :, None]
    em2 = q2[:, None, :] * force[ei[1]]
    force = force + jnp.zeros_like(force).at[ei[0]].add(em1 + em2)
    atom = atom + jnp.sum(force * (force @ p["wu"]), axis=1)
    mean = atom.mean(-1, keepdims=True)
    var = ((atom - mean) ** 2).mean(-1, keepdims=True)
    atom = (atom - mean) / jnp.sqrt(var + 1e-5) * p["ln_g"] + p["ln_b"]
    return atom, force


def make_params(key, n_features, n_basis):
    ks = jax.random.split(key, 10)
    sc = 1.0 / jnp.sqrt(n_features)
    scb = 1.0 / jnp.sqrt(n_basis)
    F, B = n_features, n_basis
    return {
        "w1": jax.random.normal(ks[0], (F, F), jnp.float32) * sc,
        "b1": jax.random.normal(ks[1], (1, F), jnp.float32) * sc,
        "w2": jax.random.normal(ks[2], (F, F), jnp.float32) * sc,
        "b2": jax.random.normal(ks[3], (1, F), jnp.float32) * sc,
        "we": jax.random.normal(ks[4], (B, F), jnp.float32) * scb,
        "wq1a": jax.random.normal(ks[5], (F, F), jnp.float32) * sc,
        "wq1b": jax.random.normal(ks[6], (F, F), jnp.float32) * sc,
        "wq2a": jax.random.normal(ks[7], (F, F), jnp.float32) * sc,
        "wq2b": jax.random.normal(ks[8], (F, F), jnp.float32) * sc,
        "wu": jax.random.normal(ks[9], (F, F), jnp.float32) * sc,
        "ln_g": jnp.ones((1, F), jnp.float32),
        "ln_b": jnp.zeros((1, F), jnp.float32),
    }


if __name__ == "__main__":
    # small but tile-friendly: F multiple of 128, E split into 2 edge tiles.
    N, E, F, B = 16, 64, 128, 16

    key = jax.random.PRNGKey(0)
    k_atom, k_force, k_dir, k_dist, k_ei, k_par = jax.random.split(key, 6)

    atom_node = jax.random.normal(k_atom, (N, F), jnp.float32)
    force_node = jax.random.normal(k_force, (N, 3, F), jnp.float32) * 0.1
    dir_raw = jax.random.normal(k_dir, (E, 3), jnp.float32)
    dir_edge = dir_raw / jnp.linalg.norm(dir_raw, axis=-1, keepdims=True)
    dist_edge = jax.random.uniform(k_dist, (E, B), jnp.float32)
    edge_index = jax.random.randint(k_ei, (2, E), 0, N, jnp.int32)

    params = make_params(k_par, F, B)

    run = jax.jit(functools.partial(interaction_net, e_tile=32))
    atom_out, force_out = run(atom_node, force_node, dir_edge,
                              dist_edge, edge_index, params)
    jax.block_until_ready((atom_out, force_out))

    atom_ref, force_ref = reference_forward(atom_node, force_node, dir_edge,
                                            dist_edge, edge_index, params)

    assert atom_out.shape == (N, F) and force_out.shape == (N, 3, F)
    # bf16 MXU operands (f32 accumulation, f32 residual/finalize path) ->
    # compare at bf16-operand tolerance against the pure-f32 reference.
    assert jnp.allclose(atom_out, atom_ref, atol=1e-1, rtol=1e-1), "atom mismatch"
    assert jnp.allclose(force_out, force_ref, atol=1e-1, rtol=1e-1), "force mismatch"

    print("KERNEL_OK")
</pallas_src>

<mosaic_0001>
module attributes {stable_mosaic.version = 11 : i64} {
  func.func @interaction_kernel(%arg0: i32, %arg1: memref<16x512xbf16, #tpu.memory_space<vmem>>, %arg2: memref<16x128xf32, #tpu.memory_space<vmem>>, %arg3: memref<16x384xf32, #tpu.memory_space<vmem>>, %arg4: memref<32x1xi32, #tpu.memory_space<vmem>>, %arg5: memref<32x1xi32, #tpu.memory_space<vmem>>, %arg6: memref<32x3xf32, #tpu.memory_space<vmem>>, %arg7: memref<32x16xbf16, #tpu.memory_space<vmem>>, %arg8: memref<16x128xbf16, #tpu.memory_space<vmem>>, %arg9: memref<128x128xbf16, #tpu.memory_space<vmem>>, %arg10: memref<128x128xbf16, #tpu.memory_space<vmem>>, %arg11: memref<128x128xbf16, #tpu.memory_space<vmem>>, %arg12: memref<128x128xbf16, #tpu.memory_space<vmem>>, %arg13: memref<128x128xbf16, #tpu.memory_space<vmem>>, %arg14: memref<1x128xf32, #tpu.memory_space<vmem>>, %arg15: memref<1x128xf32, #tpu.memory_space<vmem>>, %arg16: memref<16x128xf32, #tpu.memory_space<vmem>>, %arg17: memref<16x384xf32, #tpu.memory_space<vmem>>, %arg18: memref<16x512xf32, #tpu.memory_space<vmem>>) attributes {dimension_semantics = [#tpu.dimension_semantics<arbitrary>], iteration_bounds = array<i64: 2>, scalar_prefetch = 0 : i64, scratch_operands = 1 : i64, tpu.core_type = #tpu.core_type<tc>, window_params = [{pipeline_mode = #tpu.pipeline_mode<synchronous>, transform_indices = @transform_0, window_bounds = array<i64: 16, 512>}, {pipeline_mode = #tpu.pipeline_mode<synchronous>, transform_indices = @transform_1, window_bounds = array<i64: 16, 128>}, {pipeline_mode = #tpu.pipeline_mode<synchronous>, transform_indices = @transform_2, window_bounds = array<i64: 16, 384>}, {transform_indices = @transform_3, window_bounds = array<i64: 32, 1>}, {transform_indices = @transform_4, window_bounds = array<i64: 32, 1>}, {transform_indices = @transform_5, window_bounds = array<i64: 32, 3>}, {transform_indices = @transform_6, window_bounds = array<i64: 32, 16>}, {pipeline_mode = #tpu.pipeline_mode<synchronous>, transform_indices = @transform_7, window_bounds = array<i64: 16, 128>}, {pipeline_mode = #tpu.pipeline_mode<synchronous>, transform_indices = @transform_8, window_bounds = array<i64: 128, 128>}, {pipeline_mode = #tpu.pipeline_mode<synchronous>, transform_indices = @transform_9, window_bounds = array<i64: 128, 128>}, {pipeline_mode = #tpu.pipeline_mode<synchronous>, transform_indices = @transform_10, window_bounds = array<i64: 128, 128>}, {pipeline_mode = #tpu.pipeline_mode<synchronous>, transform_indices = @transform_11, window_bounds = array<i64: 128, 128>}, {pipeline_mode = #tpu.pipeline_mode<synchronous>, transform_indices = @transform_12, window_bounds = array<i64: 128, 128>}, {pipeline_mode = #tpu.pipeline_mode<synchronous>, transform_indices = @transform_13, window_bounds = array<i64: 1, 128>}, {pipeline_mode = #tpu.pipeline_mode<synchronous>, transform_indices = @transform_14, window_bounds = array<i64: 1, 128>}, {pipeline_mode = #tpu.pipeline_mode<synchronous>, transform_indices = @transform_15, window_bounds = array<i64: 16, 128>}, {pipeline_mode = #tpu.pipeline_mode<synchronous>, transform_indices = @transform_16, window_bounds = array<i64: 16, 384>}]} {
    %c0_i32 = arith.constant 0 : i32
    %0 = arith.cmpi eq, %arg0, %c0_i32 : i32
    %1 = arith.extui %0 : i1 to i32
    %c0_i32_0 = arith.constant 0 : i32
    %2 = arith.cmpi ne, %1, %c0_i32_0 : i32
    scf.if %2 {
      %cst_34 = arith.constant 0.000000e+00 : f32
      %79 = vector.broadcast %cst_34 : f32 to vector<16x512xf32>
      %c0_35 = arith.constant 0 : index
      %c0_36 = arith.constant 0 : index
      %80 = vector.load %arg18[%c0_35, %c0_36] : memref<16x512xf32, #tpu.memory_space<vmem>>, vector<16x512xf32>
      tpu.vector_store %arg18[%c0_35, %c0_36], %79 {strides = array<i32>} : memref<16x512xf32, #tpu.memory_space<vmem>>, vector<16x512xf32>,
    } else {
    }
    %3 = tpu.iota {dimensions = array<i32: 1>} : vector<32x16xi32>
    %c0 = arith.constant 0 : index
    %c0_1 = arith.constant 0 : index
    %4 = vector.load %arg4[%c0, %c0_1] : memref<32x1xi32, #tpu.memory_space<vmem>>, vector<32x1xi32>
    %5 = vector.broadcast %4 : vector<32x1xi32> to vector<32x16xi32>
    %6 = arith.cmpi eq, %3, %5 : vector<32x16xi32>
    %7 = arith.extui %6 : vector<32x16xi1> to vector<32x16xi32>
    %8 = arith.sitofp %7 : vector<32x16xi32> to vector<32x16xf32>
    %9 = arith.truncf %8 : vector<32x16xf32> to vector<32x16xbf16>
    %c0_2 = arith.constant 0 : index
    %c0_3 = arith.constant 0 : index
    %10 = vector.load %arg5[%c0_2, %c0_3] : memref<32x1xi32, #tpu.memory_space<vmem>>, vector<32x1xi32>
    %11 = vector.broadcast %10 : vector<32x1xi32> to vector<32x16xi32>
    %12 = arith.cmpi eq, %3, %11 : vector<32x16xi32>
    %13 = arith.extui %12 : vector<32x16xi1> to vector<32x16xi32>
    %14 = arith.sitofp %13 : vector<32x16xi32> to vector<32x16xf32>
    %15 = arith.truncf %14 : vector<32x16xf32> to vector<32x16xbf16>
    %c0_4 = arith.constant 0 : index
    %c0_5 = arith.constant 0 : index
    %16 = vector.load %arg1[%c0_4, %c0_5] : memref<16x512xbf16, #tpu.memory_space<vmem>>, vector<16x512xbf16>
    %17 = vector.extract_strided_slice %16 {offsets = [0, 0], sizes = [16, 128], strides = [1, 1]} : vector<16x512xbf16> to vector<16x128xbf16>
    %c0_6 = arith.constant 0 : index
    %c0_7 = arith.constant 0 : index
    %18 = vector.load %arg7[%c0_6, %c0_7] : memref<32x16xbf16, #tpu.memory_space<vmem>>, vector<32x16xbf16>
    %c0_8 = arith.constant 0 : index
    %c0_9 = arith.constant 0 : index
    %19 = vector.load %arg8[%c0_8, %c0_9] : memref<16x128xbf16, #tpu.memory_space<vmem>>, vector<16x128xbf16>
    %cst = arith.constant dense<0.000000e+00> : vector<32x128xf32>
    %20 = tpu.matmul %18, %19, %cst {dimension_numbers = #tpu.dot_dimension_numbers<[1], [0], [0], [1], [0, 0, 1, 1], [], []>} : vector<32x16xbf16>, vector<16x128xbf16>, vector<32x128xf32> -> vector<32x128xf32>
    %cst_10 = arith.constant dense<0.000000e+00> : vector<32x128xf32>
    %21 = tpu.matmul %9, %17, %cst_10 {dimension_numbers = #tpu.dot_dimension_numbers<[1], [0], [0], [1], [0, 0, 1, 1], [], []>} : vector<32x16xbf16>, vector<16x128xbf16>, vector<32x128xf32> -> vector<32x128xf32>
    %cst_11 = arith.constant dense<0.000000e+00> : vector<32x512xf32>
    %22 = tpu.matmul %15, %16, %cst_11 {dimension_numbers = #tpu.dot_dimension_numbers<[1], [0], [0], [1], [0, 0, 1, 1], [], []>} : vector<32x16xbf16>, vector<16x512xbf16>, vector<32x512xf32> -> vector<32x512xf32>
    %23 = vector.extract_strided_slice %22 {offsets = [0, 0], sizes = [32, 128], strides = [1, 1]} : vector<32x512xf32> to vector<32x128xf32>
    %24 = arith.mulf %20, %21 : vector<32x128xf32>
    %25 = arith.mulf %24, %23 : vector<32x128xf32>
    %26 = arith.truncf %25 : vector<32x128xf32> to vector<32x128xbf16>
    %c0_12 = arith.constant 0 : index
    %c0_13 = arith.constant 0 : index
    %27 = vector.load %arg9[%c0_12, %c0_13] : memref<128x128xbf16, #tpu.memory_space<vmem>>, vector<128x128xbf16>
    %cst_14 = arith.constant dense<0.000000e+00> : vector<32x128xf32>
    %28 = tpu.matmul %26, %27, %cst_14 {dimension_numbers = #tpu.dot_dimension_numbers<[1], [0], [0], [1], [0, 0, 1, 1], [], []>} : vector<32x128xbf16>, vector<128x128xbf16>, vector<32x128xf32> -> vector<32x128xf32>
    %29 = arith.negf %28 : vector<32x128xf32>
    %30 = math.exp %29 : vector<32x128xf32>
    %cst_15 = arith.constant 1.000000e+00 : f32
    %31 = vector.broadcast %cst_15 : f32 to vector<32x128xf32>
    %32 = arith.addf %31, %30 : vector<32x128xf32>
    %33 = arith.divf %31, %32 : vector<32x128xf32>
    %34 = arith.mulf %28, %33 : vector<32x128xf32>
    %35 = arith.truncf %34 : vector<32x128xf32> to vector<32x128xbf16>
    %c0_16 = arith.constant 0 : index
    %c0_17 = arith.constant 0 : index
    %36 = vector.load %arg10[%c0_16, %c0_17] : memref<128x128xbf16, #tpu.memory_space<vmem>>, vector<128x128xbf16>
    %cst_18 = arith.constant dense<0.000000e+00> : vector<32x128xf32>
    %37 = tpu.matmul %35, %36, %cst_18 {dimension_numbers = #tpu.dot_dimension_numbers<[1], [0], [0], [1], [0, 0, 1, 1], [], []>} : vector<32x128xbf16>, vector<128x128xbf16>, vector<32x128xf32> -> vector<32x128xf32>
    %c0_19 = arith.constant 0 : index
    %c0_20 = arith.constant 0 : index
    %38 = vector.load %arg11[%c0_19, %c0_20] : memref<128x128xbf16, #tpu.memory_space<vmem>>, vector<128x128xbf16>
    %cst_21 = arith.constant dense<0.000000e+00> : vector<32x128xf32>
    %39 = tpu.matmul %26, %38, %cst_21 {dimension_numbers = #tpu.dot_dimension_numbers<[1], [0], [0], [1], [0, 0, 1, 1], [], []>} : vector<32x128xbf16>, vector<128x128xbf16>, vector<32x128xf32> -> vector<32x128xf32>
    %40 = arith.negf %39 : vector<32x128xf32>
    %41 = math.exp %40 : vector<32x128xf32>
    %cst_22 = arith.constant 1.000000e+00 : f32
    %42 = vector.broadcast %cst_22 : f32 to vector<32x128xf32>
    %43 = arith.addf %42, %41 : vector<32x128xf32>
    %44 = arith.divf %42, %43 : vector<32x128xf32>
    %45 = arith.mulf %39, %44 : vector<32x128xf32>
    %46 = arith.truncf %45 : vector<32x128xf32> to vector<32x128xbf16>
    %c0_23 = arith.constant 0 : index
    %c0_24 = arith.constant 0 : index
    %47 = vector.load %arg12[%c0_23, %c0_24] : memref<128x128xbf16, #tpu.memory_space<vmem>>, vector<128x128xbf16>
    %cst_25 = arith.constant dense<0.000000e+00> : vector<32x128xf32>
    %48 = tpu.matmul %46, %47, %cst_25 {dimension_numbers = #tpu.dot_dimension_numbers<[1], [0], [0], [1], [0, 0, 1, 1], [], []>} : vector<32x128xbf16>, vector<128x128xbf16>, vector<32x128xf32> -> vector<32x128xf32>
    %c0_26 = arith.constant 0 : index
    %c0_27 = arith.constant 0 : index
    %49 = vector.load %arg6[%c0_26, %c0_27] : memref<32x3xf32, #tpu.memory_space<vmem>>, vector<32x3xf32>
    %50 = vector.extract_strided_slice %22 {offsets = [0, 128], sizes = [32, 128], strides = [1, 1]} : vector<32x512xf32> to vector<32x128xf32>
    %51 = vector.extract_strided_slice %49 {offsets = [0, 0], sizes = [32, 1], strides = [1, 1]} : vector<32x3xf32> to vector<32x1xf32>
    %52 = vector.broadcast %51 : vector<32x1xf32> to vector<32x128xf32>
    %53 = arith.mulf %37, %52 : vector<32x128xf32>
    %54 = arith.mulf %48, %50 : vector<32x128xf32>
    %55 = arith.addf %53, %54 : vector<32x128xf32>
    %56 = arith.truncf %55 : vector<32x128xf32> to vector<32x128xbf16>
    %57 = vector.extract_strided_slice %22 {offsets = [0, 256], sizes = [32, 128], strides = [1, 1]} : vector<32x512xf32> to vector<32x128xf32>
    %58 = vector.extract_strided_slice %49 {offsets = [0, 1], sizes = [32, 1], strides = [1, 1]} : vector<32x3xf32> to vector<32x1xf32>
    %59 = vector.broadcast %58 : vector<32x1xf32> to vector<32x128xf32>
    %60 = arith.mulf %37, %59 : vector<32x128xf32>
    %61 = arith.mulf %48, %57 : vector<32x128xf32>
    %62 = arith.addf %60, %61 : vector<32x128xf32>
    %63 = arith.truncf %62 : vector<32x128xf32> to vector<32x128xbf16>
    %64 = vector.extract_strided_slice %22 {offsets = [0, 384], sizes = [32, 128], strides = [1, 1]} : vector<32x512xf32> to vector<32x128xf32>
    %65 = vector.extract_strided_slice %49 {offsets = [0, 2], sizes = [32, 1], strides = [1, 1]} : vector<32x3xf32> to vector<32x1xf32>
    %66 = vector.broadcast %65 : vector<32x1xf32> to vector<32x128xf32>
    %67 = arith.mulf %37, %66 : vector<32x128xf32>
    %68 = arith.mulf %48, %64 : vector<32x128xf32>
    %69 = arith.addf %67, %68 : vector<32x128xf32>
    %70 = arith.truncf %69 : vector<32x128xf32> to vector<32x128xbf16>
    %71 = tpu.concatenate %26, %56, %63, %70 in 1 : vector<32x128xbf16>, vector<32x128xbf16>, vector<32x128xbf16>, vector<32x128xbf16> -> vector<32x512xbf16>
    %c0_28 = arith.constant 0 : index
    %c0_29 = arith.constant 0 : index
    %72 = vector.load %arg18[%c0_28, %c0_29] : memref<16x512xf32, #tpu.memory_space<vmem>>, vector<16x512xf32>
    %cst_30 = arith.constant dense<0.000000e+00> : vector<16x512xf32>
    %73 = tpu.matmul %9, %71, %cst_30 {dimension_numbers = #tpu.dot_dimension_numbers<[0], [0], [1], [1], [0, 1, 1, 1], [], []>} : vector<32x16xbf16>, vector<32x512xbf16>, vector<16x512xf32> -> vector<16x512xf32>
    %74 = arith.addf %72, %73 : vector<16x512xf32>
    %c0_31 = arith.constant 0 : index
    %c0_32 = arith.constant 0 : index
    %75 = vector.load %arg18[%c0_31, %c0_32] : memref<16x512xf32, #tpu.memory_space<vmem>>, vector<16x512xf32>
    tpu.vector_store %arg18[%c0_31, %c0_32], %74 {strides = array<i32>} : memref<16x512xf32, #tpu.memory_space<vmem>>, vector<16x512xf32>,
    %c1_i32 = arith.constant 1 : i32
    %76 = arith.cmpi eq, %arg0, %c1_i32 : i32
    %77 = arith.extui %76 : i1 to i32
    %c0_i32_33 = arith.constant 0 : i32
    %78 = arith.cmpi ne, %77, %c0_i32_33 : i32
    scf.if %78 {
      %c0_34 = arith.constant 0 : index
      %c0_35 = arith.constant 0 : index
      %79 = vector.load %arg18[%c0_34, %c0_35] : memref<16x512xf32, #tpu.memory_space<vmem>>, vector<16x512xf32>
      %c0_36 = arith.constant 0 : index
      %c0_37 = arith.constant 0 : index
      %80 = vector.load %arg2[%c0_36, %c0_37] : memref<16x128xf32, #tpu.memory_space<vmem>>, vector<16x128xf32>
      %81 = vector.extract_strided_slice %79 {offsets = [0, 0], sizes = [16, 128], strides = [1, 1]} : vector<16x512xf32> to vector<16x128xf32>
      %82 = arith.addf %80, %81 : vector<16x128xf32>
      %c0_38 = arith.constant 0 : index
      %c0_39 = arith.constant 0 : index
      %83 = vector.load %arg3[%c0_38, %c0_39] : memref<16x384xf32, #tpu.memory_space<vmem>>, vector<16x384xf32>
      %84 = vector.extract_strided_slice %79 {offsets = [0, 128], sizes = [16, 384], strides = [1, 1]} : vector<16x512xf32> to vector<16x384xf32>
      %85 = arith.addf %83, %84 : vector<16x384xf32>
      %c0_40 = arith.constant 0 : index
      %c0_41 = arith.constant 0 : index
      %86 = vector.load %arg17[%c0_40, %c0_41] : memref<16x384xf32, #tpu.memory_space<vmem>>, vector<16x384xf32>
      tpu.vector_store %arg17[%c0_40, %c0_41], %85 {strides = array<i32>} : memref<16x384xf32, #tpu.memory_space<vmem>>, vector<16x384xf32>,
      %87 = arith.truncf %85 : vector<16x384xf32> to vector<16x384xbf16>
      %cst_42 = arith.constant 0.000000e+00 : f32
      %88 = vector.broadcast %cst_42 : f32 to vector<16x128xf32>
      %89 = vector.extract_strided_slice %85 {offsets = [0, 0], sizes = [16, 128], strides = [1, 1]} : vector<16x384xf32> to vector<16x128xf32>
      %90 = vector.extract_strided_slice %87 {offsets = [0, 0], sizes = [16, 128], strides = [1, 1]} : vector<16x384xbf16> to vector<16x128xbf16>
      %c0_43 = arith.constant 0 : index
      %c0_44 = arith.constant 0 : index
      %91 = vector.load %arg13[%c0_43, %c0_44] : memref<128x128xbf16, #tpu.memory_space<vmem>>, vector<128x128xbf16>
      %cst_45 = arith.constant dense<0.000000e+00> : vector<16x128xf32>
      %92 = tpu.matmul %90, %91, %cst_45 {dimension_numbers = #tpu.dot_dimension_numbers<[1], [0], [0], [1], [0, 0, 1, 1], [], []>} : vector<16x128xbf16>, vector<128x128xbf16>, vector<16x128xf32> -> vector<16x128xf32>
      %93 = arith.mulf %89, %92 : vector<16x128xf32>
      %94 = arith.addf %88, %93 : vector<16x128xf32>
      %95 = vector.extract_strided_slice %85 {offsets = [0, 128], sizes = [16, 128], strides = [1, 1]} : vector<16x384xf32> to vector<16x128xf32>
      %96 = vector.extract_strided_slice %87 {offsets = [0, 128], sizes = [16, 128], strides = [1, 1]} : vector<16x384xbf16> to vector<16x128xbf16>
      %c0_46 = arith.constant 0 : index
      %c0_47 = arith.constant 0 : index
      %97 = vector.load %arg13[%c0_46, %c0_47] : memref<128x128xbf16, #tpu.memory_space<vmem>>, vector<128x128xbf16>
      %cst_48 = arith.constant dense<0.000000e+00> : vector<16x128xf32>
      %98 = tpu.matmul %96, %97, %cst_48 {dimension_numbers = #tpu.dot_dimension_numbers<[1], [0], [0], [1], [0, 0, 1, 1], [], []>} : vector<16x128xbf16>, vector<128x128xbf16>, vector<16x128xf32> -> vector<16x128xf32>
      %99 = arith.mulf %95, %98 : vector<16x128xf32>
      %100 = arith.addf %94, %99 : vector<16x128xf32>
      %101 = vector.extract_strided_slice %85 {offsets = [0, 256], sizes = [16, 128], strides = [1, 1]} : vector<16x384xf32> to vector<16x128xf32>
      %102 = vector.extract_strided_slice %87 {offsets = [0, 256], sizes = [16, 128], strides = [1, 1]} : vector<16x384xbf16> to vector<16x128xbf16>
      %c0_49 = arith.constant 0 : index
      %c0_50 = arith.constant 0 : index
      %103 = vector.load %arg13[%c0_49, %c0_50] : memref<128x128xbf16, #tpu.memory_space<vmem>>, vector<128x128xbf16>
      %cst_51 = arith.constant dense<0.000000e+00> : vector<16x128xf32>
      %104 = tpu.matmul %102, %103, %cst_51 {dimension_numbers = #tpu.dot_dimension_numbers<[1], [0], [0], [1], [0, 0, 1, 1], [], []>} : vector<16x128xbf16>, vector<128x128xbf16>, vector<16x128xf32> -> vector<16x128xf32>
      %105 = arith.mulf %101, %104 : vector<16x128xf32>
      %106 = arith.addf %100, %105 : vector<16x128xf32>
      %107 = arith.addf %82, %106 : vector<16x128xf32>
      %cst_52 = arith.constant dense<0.000000e+00> : vector<16xf32>
      %108 = vector.multi_reduction <add>, %107, %cst_52 [1] : vector<16x128xf32> to vector<16xf32>
      %109 = vector.shape_cast %108 : vector<16xf32> to vector<16x1xf32>
      %cst_53 = arith.constant 1.280000e+02 : f32
      %110 = vector.broadcast %cst_53 : f32 to vector<16x1xf32>
      %111 = arith.divf %109, %110 : vector<16x1xf32>
      %112 = vector.broadcast %111 : vector<16x1xf32> to vector<16x128xf32>
      %113 = arith.subf %107, %112 : vector<16x128xf32>
      %114 = arith.mulf %113, %113 : vector<16x128xf32>
      %cst_54 = arith.constant dense<0.000000e+00> : vector<16xf32>
      %115 = vector.multi_reduction <add>, %114, %cst_54 [1] : vector<16x128xf32> to vector<16xf32>
      %116 = vector.shape_cast %115 : vector<16xf32> to vector<16x1xf32>
      %cst_55 = arith.constant 1.280000e+02 : f32
      %117 = vector.broadcast %cst_55 : f32 to vector<16x1xf32>
      %118 = arith.divf %116, %117 : vector<16x1xf32>
      %119 = vector.broadcast %111 : vector<16x1xf32> to vector<16x128xf32>
      %120 = arith.subf %107, %119 : vector<16x128xf32>
      %cst_56 = arith.constant 9.99999974E-6 : f32
      %121 = vector.broadcast %cst_56 : f32 to vector<16x1xf32>
      %122 = arith.addf %118, %121 : vector<16x1xf32>
      %123 = math.rsqrt %122 : vector<16x1xf32>
      %124 = vector.broadcast %123 : vector<16x1xf32> to vector<16x128xf32>
      %125 = arith.mulf %120, %124 : vector<16x128xf32>
      %c0_57 = arith.constant 0 : index
      %c0_58 = arith.constant 0 : index
      %126 = vector.load %arg14[%c0_57, %c0_58] : memref<1x128xf32, #tpu.memory_space<vmem>>, vector<1x128xf32>
      %127 = vector.broadcast %126 : vector<1x128xf32> to vector<16x128xf32>
      %128 = arith.mulf %125, %127 : vector<16x128xf32>
      %c0_59 = arith.constant 0 : index
      %c0_60 = arith.constant 0 : index
      %129 = vector.load %arg15[%c0_59, %c0_60] : memref<1x128xf32, #tpu.memory_space<vmem>>, vector<1x128xf32>
      %130 = vector.broadcast %129 : vector<1x128xf32> to vector<16x128xf32>
      %131 = arith.addf %128, %130 : vector<16x128xf32>
      %c0_61 = arith.constant 0 : index
      %c0_62 = arith.constant 0 : index
      %132 = vector.load %arg16[%c0_61, %c0_62] : memref<16x128xf32, #tpu.memory_space<vmem>>, vector<16x128xf32>
      tpu.vector_store %arg16[%c0_61, %c0_62], %131 {strides = array<i32>} : memref<16x128xf32, #tpu.memory_space<vmem>>, vector<16x128xf32>,
    } else {
    }
    return
  }
  func.func @transform_0(%arg0: i32) -> (i32, i32) {
    %c0_i32 = arith.constant 0 : i32
    %c0_i32_0 = arith.constant 0 : i32
    %c0_i32_1 = arith.constant 0 : i32
    return %c0_i32, %c0_i32_0 : i32, i32
  }
  func.func @transform_1(%arg0: i32) -> (i32, i32) {
    %c0_i32 = arith.constant 0 : i32
    %c0_i32_0 = arith.constant 0 : i32
    %c0_i32_1 = arith.constant 0 : i32
    return %c0_i32, %c0_i32_0 : i32, i32
  }
  func.func @transform_2(%arg0: i32) -> (i32, i32) {
    %c0_i32 = arith.constant 0 : i32
    %c0_i32_0 = arith.constant 0 : i32
    %c0_i32_1 = arith.constant 0 : i32
    return %c0_i32, %c0_i32_0 : i32, i32
  }
  func.func @transform_3(%arg0: i32) -> (i32, i32) {
    %c0_i32 = arith.constant 0 : i32
    %c0_i32_0 = arith.constant 0 : i32
    return %arg0, %c0_i32 : i32, i32
  }
  func.func @transform_4(%arg0: i32) -> (i32, i32) {
    %c0_i32 = arith.constant 0 : i32
    %c0_i32_0 = arith.constant 0 : i32
    return %arg0, %c0_i32 : i32, i32
  }
  func.func @transform_5(%arg0: i32) -> (i32, i32) {
    %c0_i32 = arith.constant 0 : i32
    %c0_i32_0 = arith.constant 0 : i32
    return %arg0, %c0_i32 : i32, i32
  }
  func.func @transform_6(%arg0: i32) -> (i32, i32) {
    %c0_i32 = arith.constant 0 : i32
    %c0_i32_0 = arith.constant 0 : i32
    return %arg0, %c0_i32 : i32, i32
  }
  func.func @transform_7(%arg0: i32) -> (i32, i32) {
    %c0_i32 = arith.constant 0 : i32
    %c0_i32_0 = arith.constant 0 : i32
    %c0_i32_1 = arith.constant 0 : i32
    return %c0_i32, %c0_i32_0 : i32, i32
  }
  func.func @transform_8(%arg0: i32) -> (i32, i32) {
    %c0_i32 = arith.constant 0 : i32
    %c0_i32_0 = arith.constant 0 : i32
    %c0_i32_1 = arith.constant 0 : i32
    return %c0_i32, %c0_i32_0 : i32, i32
  }
  func.func @transform_9(%arg0: i32) -> (i32, i32) {
    %c0_i32 = arith.constant 0 : i32
    %c0_i32_0 = arith.constant 0 : i32
    %c0_i32_1 = arith.constant 0 : i32
    return %c0_i32, %c0_i32_0 : i32, i32
  }
  func.func @transform_10(%arg0: i32) -> (i32, i32) {
    %c0_i32 = arith.constant 0 : i32
    %c0_i32_0 = arith.constant 0 : i32
    %c0_i32_1 = arith.constant 0 : i32
    return %c0_i32, %c0_i32_0 : i32, i32
  }
  func.func @transform_11(%arg0: i32) -> (i32, i32) {
    %c0_i32 = arith.constant 0 : i32
    %c0_i32_0 = arith.constant 0 : i32
    %c0_i32_1 = arith.constant 0 : i32
    return %c0_i32, %c0_i32_0 : i32, i32
  }
  func.func @transform_12(%arg0: i32) -> (i32, i32) {
    %c0_i32 = arith.constant 0 : i32
    %c0_i32_0 = arith.constant 0 : i32
    %c0_i32_1 = arith.constant 0 : i32
    return %c0_i32, %c0_i32_0 : i32, i32
  }
  func.func @transform_13(%arg0: i32) -> (i32, i32) {
    %c0_i32 = arith.constant 0 : i32
    %c0_i32_0 = arith.constant 0 : i32
    %c0_i32_1 = arith.constant 0 : i32
    return %c0_i32, %c0_i32_0 : i32, i32
  }
  func.func @transform_14(%arg0: i32) -> (i32, i32) {
    %c0_i32 = arith.constant 0 : i32
    %c0_i32_0 = arith.constant 0 : i32
    %c0_i32_1 = arith.constant 0 : i32
    return %c0_i32, %c0_i32_0 : i32, i32
  }
  func.func @transform_15(%arg0: i32) -> (i32, i32) {
    %c0_i32 = arith.constant 0 : i32
    %c0_i32_0 = arith.constant 0 : i32
    %c0_i32_1 = arith.constant 0 : i32
    return %c0_i32, %c0_i32_0 : i32, i32
  }
  func.func @transform_16(%arg0: i32) -> (i32, i32) {
    %c0_i32 = arith.constant 0 : i32
    %c0_i32_0 = arith.constant 0 : i32
    %c0_i32_1 = arith.constant 0 : i32
    return %c0_i32, %c0_i32_0 : i32, i32
  }
}

</mosaic_0001>

<llo_original>
// kernel: interaction_net.1
$region0: #{interaction_net.1}
  #allocation0 [shape = 'u32[]', space=smem, size = 0x4, offset = 0x4, fixed_abs, tag = 'smem constant byte address 0x4 - core index']
  #allocation1 [shape = 'u32[144,128]{1,0:T(1,128)}', space=vmem, size = 0x12000, scoped, tag = 'internal scratch']
  #allocation2 [shape = 'f32[16,512]{1,0:T(8,128)}', space=vmem, size = 0x8000, scoped, tag = 'scratch operand']
  %s0 = inlined_call_operand.vmem [shape: bf16[16,512], index: 0, kind: input, shape index: {}]
  %s1 = inlined_call_operand.vmem [shape: f32[16,128], index: 1, kind: input, shape index: {}]
  %s2 = inlined_call_operand.vmem [shape: f32[16,384], index: 2, kind: input, shape index: {}]
  %s3 = inlined_call_operand.vmem [shape: s32[64,1], index: 3, kind: input, shape index: {}]
  %s4 = inlined_call_operand.vmem [shape: s32[64,1], index: 4, kind: input, shape index: {}]
  %s5 = inlined_call_operand.vmem [shape: f32[64,3], index: 5, kind: input, shape index: {}]
  %s6 = inlined_call_operand.vmem [shape: bf16[64,16], index: 6, kind: input, shape index: {}]
  %s7 = inlined_call_operand.vmem [shape: bf16[16,128], index: 7, kind: input, shape index: {}]
  %s8 = inlined_call_operand.vmem [shape: bf16[128,128], index: 8, kind: input, shape index: {}]
  %s9 = inlined_call_operand.vmem [shape: bf16[128,128], index: 9, kind: input, shape index: {}]
  %s10 = inlined_call_operand.vmem [shape: bf16[128,128], index: 10, kind: input, shape index: {}]
  %s11 = inlined_call_operand.vmem [shape: bf16[128,128], index: 11, kind: input, shape index: {}]
  %s12 = inlined_call_operand.vmem [shape: bf16[128,128], index: 12, kind: input, shape index: {}]
  %s13 = inlined_call_operand.vmem [shape: f32[1,128], index: 13, kind: input, shape index: {}]
  %s14 = inlined_call_operand.vmem [shape: f32[1,128], index: 14, kind: input, shape index: {}]
  %s15 = inlined_call_operand.hbm [shape: f32[16,128], index: 15, kind: output, shape index: {0}]
  %s16 = inlined_call_operand.vmem [shape: f32[16,384], index: 16, kind: output, shape index: {1}]
  %17 = xla_tuple %s15, %s16
  %s18 = sld [smem:[#allocation0]]
  $region109: #{interaction_net.1} parent=0
    _
  %s20 = ssub.s32 1, %s18
  %s21 = scalar_select 0, %s20, %s18
  $region1: #{interaction_net.1} parent=0
    #allocation3 [shape = 'u8[8192]{0}', space=vmem, size = 0x2000, scoped, tag = 'output window, operand 0, single buffered']
    #allocation4 [shape = 's32[2]{0}', space=sflag, size = 0x8, scoped, tag = 'scoped memory for interaction_net.1']
    %22 = vsyncpa [#allocation4], 0
    loop: start=0, step=1, limit=4
    $region2: #{interaction_net.1} parent=1 // loop_pre_header
      _
    $region3: #{interaction_net.1} parent=1 // loop_header
      %s24 = sphi 0, %s28
      %p25 = scmp.ge.s32.totalorder %s24, 4
      %s32 = sphi 0, %s32
      %s34 = sphi 0, %s32
      %s35 = sphi 0, %s34
      %s49 = sphi 0, %s35
      %s53 = sphi 0, %s53
      %s55 = sphi 0, %s53
      %s56 = sphi 0, %s55
      %s70 = sphi 0, %s56
      %s74 = sphi 0, %s74
      %s76 = sphi 0, %s74
      %s77 = sphi 0, %s76
      %s91 = sphi 0, %s77
      %s97 = sphi 0, %s99
      %s100 = sphi 0, %s97
      %s101 = sphi 0, %s100
      %s117 = sphi 0, %s101
      %s123 = sphi 0, %s125
      %s126 = sphi 0, %s123
      %s127 = sphi 0, %s126
      %s143 = sphi 0, %s127
      %s149 = sphi 0, %s151
      %s152 = sphi 0, %s149
      %s153 = sphi 0, %s152
      %s169 = sphi 0, %s153
      %s175 = sphi 0, %s177
      %s178 = sphi 0, %s175
      %s179 = sphi 0, %s178
      %s195 = sphi 0, %s179
      %s199 = sphi 0, %s199
      %s201 = sphi 0, %s199
      %s202 = sphi 0, %s201
      %s216 = sphi 0, %s202
      %s220 = sphi 0, %s220
      %s222 = sphi 0, %s220
      %s223 = sphi 0, %s222
      %s237 = sphi 0, %s223
      %s241 = sphi 0, %s241
      %s243 = sphi 0, %s241
      %s244 = sphi 0, %s243
      %s258 = sphi 0, %s244
      %s262 = sphi 0, %s262
      %s264 = sphi 0, %s262
      %s265 = sphi 0, %s264
      %s279 = sphi 0, %s265
      %s283 = sphi 0, %s283
      %s285 = sphi 0, %s283
      %s286 = sphi 0, %s285
      %s300 = sphi 0, %s286
      %s304 = sphi 0, %s304
      %s306 = sphi 0, %s304
      %s307 = sphi 0, %s306
      %s321 = sphi 0, %s307
      %s325 = sphi 0, %s325
      %s327 = sphi 0, %s325
      %s328 = sphi 0, %s327
      %s342 = sphi 0, %s328
      %s346 = sphi 0, %s346
      %s348 = sphi 0, %s346
      %s349 = sphi 0, %s348
      %s363 = sphi 0, %s349
      %s367 = sphi 0, %s367
      %s369 = sphi 0, %s367
      %s370 = sphi 0, %s369
      %s384 = sphi 0, %s370
      %s388 = sphi 0, %s388
      %s390 = sphi 0, %s388
      %s391 = sphi 0, %s390
      %s405 = sphi 0, %s391
    $region4: #{interaction_net.1} parent=1 // loop_header_branch
      %27 = sbr.rel (%p25) target = $region8
    $region5: #{interaction_net.1} parent=1 // loop_body
      %s29 = ssub.s32 %s24, 1
      %s30 = ssub.s32 %s24, 2
      %s31 = sadd.s32 %s24, 1
      %s33 = sadd.s32 %s32, 1
      %p36 = scmp.eq.s32.totalorder %s24, 1
      %p37 = scmp.ne.s32.totalorder %s32, %s34
      %p38 = scmp.eq.s32.totalorder %s24, 0
      %p39 = por %p37, %p38
      %p40 = scmp.ne.s32.totalorder %s32, %s34
      %p41 = scmp.eq.s32.totalorder %s29, 1
      %p42 = por %p40, %p41
      %p43 = scmp.ne.s32.totalorder %s34, %s35
      %p44 = scmp.eq.s32.totalorder %s29, 0
      %p45 = por %p43, %p44
      %p46 = scmp.ne.s32.totalorder %s34, %s35
      %p47 = scmp.eq.s32.totalorder %s30, 1
      %p48 = por %p46, %p47
      %p50 = scmp.ne.s32.totalorder %s35, %s49
      %p51 = scmp.eq.s32.totalorder %s30, 0
      %p52 = por %p50, %p51
      %s54 = sadd.s32 %s53, 1
      %p57 = scmp.eq.s32.totalorder %s24, 1
      %p58 = scmp.ne.s32.totalorder %s53, %s55
      %p59 = scmp.eq.s32.totalorder %s24, 0
      %p60 = por %p58, %p59
      %p61 = scmp.ne.s32.totalorder %s53, %s55
      %p62 = scmp.eq.s32.totalorder %s29, 1
      %p63 = por %p61, %p62
      %p64 = scmp.ne.s32.totalorder %s55, %s56
      %p65 = scmp.eq.s32.totalorder %s29, 0
      %p66 = por %p64, %p65
      %p67 = scmp.ne.s32.totalorder %s55, %s56
      %p68 = scmp.eq.s32.totalorder %s30, 1
      %p69 = por %p67, %p68
      %p71 = scmp.ne.s32.totalorder %s56, %s70
      %p72 = scmp.eq.s32.totalorder %s30, 0
      %p73 = por %p71, %p72
      %s75 = sadd.s32 %s74, 1
      %p78 = scmp.eq.s32.totalorder %s24, 1
      %p79 = scmp.ne.s32.totalorder %s74, %s76
      %p80 = scmp.eq.s32.totalorder %s24, 0
      %p81 = por %p79, %p80
      %p82 = scmp.ne.s32.totalorder %s74, %s76
      %p83 = scmp.eq.s32.totalorder %s29, 1
      %p84 = por %p82, %p83
      %p85 = scmp.ne.s32.totalorder %s76, %s77
      %p86 = scmp.eq.s32.totalorder %s29, 0
      %p87 = por %p85, %p86
      %p88 = scmp.ne.s32.totalorder %s76, %s77
      %p89 = scmp.eq.s32.totalorder %s30, 1
      %p90 = por %p88, %p89
      %p92 = scmp.ne.s32.totalorder %s77, %s91
      %p93 = scmp.eq.s32.totalorder %s30, 0
      %p94 = por %p92, %p93
      %s95 = ssub.s32 %s24, %s31
      %p96 = scmp.eq.s32.totalorder %s95, 0
      %s98 = sadd.s32 %s97, 1
      %s99 = scalar_select %p96, %s97, %s98
      %p102 = pneg %p96
      %p103 = scmp.eq.s32.totalorder %s24, 1
      %p104 = por %p102, %p103
      %p105 = scmp.ne.s32.totalorder %s97, %s100
      %p106 = scmp.eq.s32.totalorder %s24, 0
      %p107 = por %p105, %p106
      %p108 = scmp.ne.s32.totalorder %s97, %s100
      %p109 = scmp.eq.s32.totalorder %s29, 1
      %p110 = por %p108, %p109
      %p111 = scmp.ne.s32.totalorder %s100, %s101
      %p112 = scmp.eq.s32.totalorder %s29, 0
      %p113 = por %p111, %p112
      %p114 = scmp.ne.s32.totalorder %s100, %s101
      %p115 = scmp.eq.s32.totalorder %s30, 1
      %p116 = por %p114, %p115
      %p118 = scmp.ne.s32.totalorder %s101, %s117
      %p119 = scmp.eq.s32.totalorder %s30, 0
      %p120 = por %p118, %p119
      %s121 = ssub.s32 %s24, %s31
      %p122 = scmp.eq.s32.totalorder %s121, 0
      %s124 = sadd.s32 %s123, 1
      %s125 = scalar_select %p122, %s123, %s124
      %p128 = pneg %p122
      %p129 = scmp.eq.s32.totalorder %s24, 1
      %p130 = por %p128, %p129
      %p131 = scmp.ne.s32.totalorder %s123, %s126
      %p132 = scmp.eq.s32.totalorder %s24, 0
      %p133 = por %p131, %p132
      %p134 = scmp.ne.s32.totalorder %s123, %s126
      %p135 = scmp.eq.s32.totalorder %s29, 1
      %p136 = por %p134, %p135
      %p137 = scmp.ne.s32.totalorder %s126, %s127
      %p138 = scmp.eq.s32.totalorder %s29, 0
      %p139 = por %p137, %p138
      %p140 = scmp.ne.s32.totalorder %s126, %s127
      %p141 = scmp.eq.s32.totalorder %s30, 1
      %p142 = por %p140, %p141
      %p144 = scmp.ne.s32.totalorder %s127, %s143
      %p145 = scmp.eq.s32.totalorder %s30, 0
      %p146 = por %p144, %p145
      %s147 = ssub.s32 %s24, %s31
      %p148 = scmp.eq.s32.totalorder %s147, 0
      %s150 = sadd.s32 %s149, 1
      %s151 = scalar_select %p148, %s149, %s150
      %p154 = pneg %p148
      %p155 = scmp.eq.s32.totalorder %s24, 1
      %p156 = por %p154, %p155
      %p157 = scmp.ne.s32.totalorder %s149, %s152
      %p158 = scmp.eq.s32.totalorder %s24, 0
      %p159 = por %p157, %p158
      %p160 = scmp.ne.s32.totalorder %s149, %s152
      %p161 = scmp.eq.s32.totalorder %s29, 1
      %p162 = por %p160, %p161
      %p163 = scmp.ne.s32.totalorder %s152, %s153
      %p164 = scmp.eq.s32.totalorder %s29, 0
      %p165 = por %p163, %p164
      %p166 = scmp.ne.s32.totalorder %s152, %s153
      %p167 = scmp.eq.s32.totalorder %s30, 1
      %p168 = por %p166, %p167
      %p170 = scmp.ne.s32.totalorder %s153, %s169
      %p171 = scmp.eq.s32.totalorder %s30, 0
      %p172 = por %p170, %p171
      %s173 = ssub.s32 %s24, %s31
      %p174 = scmp.eq.s32.totalorder %s173, 0
      %s176 = sadd.s32 %s175, 1
      %s177 = scalar_select %p174, %s175, %s176
      %p180 = pneg %p174
      %p181 = scmp.eq.s32.totalorder %s24, 1
      %p182 = por %p180, %p181
      %p183 = scmp.ne.s32.totalorder %s175, %s178
      %p184 = scmp.eq.s32.totalorder %s24, 0
      %p185 = por %p183, %p184
      %p186 = scmp.ne.s32.totalorder %s175, %s178
      %p187 = scmp.eq.s32.totalorder %s29, 1
      %p188 = por %p186, %p187
      %p189 = scmp.ne.s32.totalorder %s178, %s179
      %p190 = scmp.eq.s32.totalorder %s29, 0
      %p191 = por %p189, %p190
      %p192 = scmp.ne.s32.totalorder %s178, %s179
      %p193 = scmp.eq.s32.totalorder %s30, 1
      %p194 = por %p192, %p193
      %p196 = scmp.ne.s32.totalorder %s179, %s195
      %p197 = scmp.eq.s32.totalorder %s30, 0
      %p198 = por %p196, %p197
      %s200 = sadd.s32 %s199, 1
      %p203 = scmp.eq.s32.totalorder %s24, 1
      %p204 = scmp.ne.s32.totalorder %s199, %s201
      %p205 = scmp.eq.s32.totalorder %s24, 0
      %p206 = por %p204, %p205
      %p207 = scmp.ne.s32.totalorder %s199, %s201
      %p208 = scmp.eq.s32.totalorder %s29, 1
      %p209 = por %p207, %p208
      %p210 = scmp.ne.s32.totalorder %s201, %s202
      %p211 = scmp.eq.s32.totalorder %s29, 0
      %p212 = por %p210, %p211
      %p213 = scmp.ne.s32.totalorder %s201, %s202
      %p214 = scmp.eq.s32.totalorder %s30, 1
      %p215 = por %p213, %p214
      %p217 = scmp.ne.s32.totalorder %s202, %s216
      %p218 = scmp.eq.s32.totalorder %s30, 0
      %p219 = por %p217, %p218
      %s221 = sadd.s32 %s220, 1
      %p224 = scmp.eq.s32.totalorder %s24, 1
      %p225 = scmp.ne.s32.totalorder %s220, %s222
      %p226 = scmp.eq.s32.totalorder %s24, 0
      %p227 = por %p225, %p226
      %p228 = scmp.ne.s32.totalorder %s220, %s222
      %p229 = scmp.eq.s32.totalorder %s29, 1
      %p230 = por %p228, %p229
      %p231 = scmp.ne.s32.totalorder %s222, %s223
      %p232 = scmp.eq.s32.totalorder %s29, 0
      %p233 = por %p231, %p232
      %p234 = scmp.ne.s32.totalorder %s222, %s223
      %p235 = scmp.eq.s32.totalorder %s30, 1
      %p236 = por %p234, %p235
      %p238 = scmp.ne.s32.totalorder %s223, %s237
      %p239 = scmp.eq.s32.totalorder %s30, 0
      %p240 = por %p238, %p239
      %s242 = sadd.s32 %s241, 1
      %p245 = scmp.eq.s32.totalorder %s24, 1
      %p246 = scmp.ne.s32.totalorder %s241, %s243
      %p247 = scmp.eq.s32.totalorder %s24, 0
      %p248 = por %p246, %p247
      %p249 = scmp.ne.s32.totalorder %s241, %s243
      %p250 = scmp.eq.s32.totalorder %s29, 1
      %p251 = por %p249, %p250
      %p252 = scmp.ne.s32.totalorder %s243, %s244
      %p253 = scmp.eq.s32.totalorder %s29, 0
      %p254 = por %p252, %p253
      %p255 = scmp.ne.s32.totalorder %s243, %s244
      %p256 = scmp.eq.s32.totalorder %s30, 1
      %p257 = por %p255, %p256
      %p259 = scmp.ne.s32.totalorder %s244, %s258
      %p260 = scmp.eq.s32.totalorder %s30, 0
      %p261 = por %p259, %p260
      %s263 = sadd.s32 %s262, 1
      %p266 = scmp.eq.s32.totalorder %s24, 1
      %p267 = scmp.ne.s32.totalorder %s262, %s264
      %p268 = scmp.eq.s32.totalorder %s24, 0
      %p269 = por %p267, %p268
      %p270 = scmp.ne.s32.totalorder %s262, %s264
      %p271 = scmp.eq.s32.totalorder %s29, 1
      %p272 = por %p270, %p271
      %p273 = scmp.ne.s32.totalorder %s264, %s265
      %p274 = scmp.eq.s32.totalorder %s29, 0
      %p275 = por %p273, %p274
      %p276 = scmp.ne.s32.totalorder %s264, %s265
      %p277 = scmp.eq.s32.totalorder %s30, 1
      %p278 = por %p276, %p277
      %p280 = scmp.ne.s32.totalorder %s265, %s279
      %p281 = scmp.eq.s32.totalorder %s30, 0
      %p282 = por %p280, %p281
      %s284 = sadd.s32 %s283, 1
      %p287 = scmp.eq.s32.totalorder %s24, 1
      %p288 = scmp.ne.s32.totalorder %s283, %s285
      %p289 = scmp.eq.s32.totalorder %s24, 0
      %p290 = por %p288, %p289
      %p291 = scmp.ne.s32.totalorder %s283, %s285
      %p292 = scmp.eq.s32.totalorder %s29, 1
      %p293 = por %p291, %p292
      %p294 = scmp.ne.s32.totalorder %s285, %s286
      %p295 = scmp.eq.s32.totalorder %s29, 0
      %p296 = por %p294, %p295
      %p297 = scmp.ne.s32.totalorder %s285, %s286
      %p298 = scmp.eq.s32.totalorder %s30, 1
      %p299 = por %p297, %p298
      %p301 = scmp.ne.s32.totalorder %s286, %s300
      %p302 = scmp.eq.s32.totalorder %s30, 0
      %p303 = por %p301, %p302
      %s305 = sadd.s32 %s304, 1
      %p308 = scmp.eq.s32.totalorder %s24, 1
      %p309 = scmp.ne.s32.totalorder %s304, %s306
      %p310 = scmp.eq.s32.totalorder %s24, 0
      %p311 = por %p309, %p310
      %p312 = scmp.ne.s32.totalorder %s304, %s306
      %p313 = scmp.eq.s32.totalorder %s29, 1
      %p314 = por %p312, %p313
      %p315 = scmp.ne.s32.totalorder %s306, %s307
      %p316 = scmp.eq.s32.totalorder %s29, 0
      %p317 = por %p315, %p316
      %p318 = scmp.ne.s32.totalorder %s306, %s307
      %p319 = scmp.eq.s32.totalorder %s30, 1
      %p320 = por %p318, %p319
      %p322 = scmp.ne.s32.totalorder %s307, %s321
      %p323 = scmp.eq.s32.totalorder %s30, 0
      %p324 = por %p322, %p323
      %s326 = sadd.s32 %s325, 1
      %p329 = scmp.eq.s32.totalorder %s24, 1
      %p330 = scmp.ne.s32.totalorder %s325, %s327
      %p331 = scmp.eq.s32.totalorder %s24, 0
      %p332 = por %p330, %p331
      %p333 = scmp.ne.s32.totalorder %s325, %s327
      %p334 = scmp.eq.s32.totalorder %s29, 1
      %p335 = por %p333, %p334
      %p336 = scmp.ne.s32.totalorder %s327, %s328
      %p337 = scmp.eq.s32.totalorder %s29, 0
      %p338 = por %p336, %p337
      %p339 = scmp.ne.s32.totalorder %s327, %s328
      %p340 = scmp.eq.s32.totalorder %s30, 1
      %p341 = por %p339, %p340
      %p343 = scmp.ne.s32.totalorder %s328, %s342
      %p344 = scmp.eq.s32.totalorder %s30, 0
      %p345 = por %p343, %p344
      %s347 = sadd.s32 %s346, 1
      %p350 = scmp.eq.s32.totalorder %s24, 1
      %p351 = scmp.ne.s32.totalorder %s346, %s348
      %p352 = scmp.eq.s32.totalorder %s24, 0
      %p353 = por %p351, %p352
      %p354 = scmp.ne.s32.totalorder %s346, %s348
      %p355 = scmp.eq.s32.totalorder %s29, 1
      %p356 = por %p354, %p355
      %p357 = scmp.ne.s32.totalorder %s348, %s349
      %p358 = scmp.eq.s32.totalorder %s29, 0
      %p359 = por %p357, %p358
      %p360 = scmp.ne.s32.totalorder %s348, %s349
      %p361 = scmp.eq.s32.totalorder %s30, 1
      %p362 = por %p360, %p361
      %p364 = scmp.ne.s32.totalorder %s349, %s363
      %p365 = scmp.eq.s32.totalorder %s30, 0
      %p366 = por %p364, %p365
      %s368 = sadd.s32 %s367, 1
      %p371 = scmp.eq.s32.totalorder %s24, 1
      %p372 = scmp.ne.s32.totalorder %s367, %s369
      %p373 = scmp.eq.s32.totalorder %s24, 0
      %p374 = por %p372, %p373
      %p375 = scmp.ne.s32.totalorder %s367, %s369
      %p376 = scmp.eq.s32.totalorder %s29, 1
      %p377 = por %p375, %p376
      %p378 = scmp.ne.s32.totalorder %s369, %s370
      %p379 = scmp.eq.s32.totalorder %s29, 0
      %p380 = por %p378, %p379
      %p381 = scmp.ne.s32.totalorder %s369, %s370
      %p382 = scmp.eq.s32.totalorder %s30, 1
      %p383 = por %p381, %p382
      %p385 = scmp.ne.s32.totalorder %s370, %s384
      %p386 = scmp.eq.s32.totalorder %s30, 0
      %p387 = por %p385, %p386
      %s389 = sadd.s32 %s388, 1
      %p392 = scmp.eq.s32.totalorder %s24, 1
      %p393 = scmp.ne.s32.totalorder %s388, %s390
      %p394 = scmp.eq.s32.totalorder %s24, 0
      %p395 = por %p393, %p394
      %p396 = scmp.ne.s32.totalorder %s388, %s390
      %p397 = scmp.eq.s32.totalorder %s29, 1
      %p398 = por %p396, %p397
      %p399 = scmp.ne.s32.totalorder %s390, %s391
      %p400 = scmp.eq.s32.totalorder %s29, 0
      %p401 = por %p399, %p400
      %p402 = scmp.ne.s32.totalorder %s390, %s391
      %p403 = scmp.eq.s32.totalorder %s30, 1
      %p404 = por %p402, %p403
      %p406 = scmp.ne.s32.totalorder %s391, %s405
      %p407 = scmp.eq.s32.totalorder %s30, 0
      %p408 = por %p406, %p407
      %p409 = scmp.le.s32.totalorder 1, %s24
      %p410 = scmp.lt.s32.totalorder %s24, 3
      %p411 = pnand %p409, %p410
      %p412 = pneg %p411
      // Predicated region
      $region9: #{interaction_net.1} parent=5 // pred_check
        _
      $region10: #{interaction_net.1} parent=5 // pred_check_branch
        %414 = sbr.rel (%p411) target = $region12
      $region11: #{interaction_net.1} parent=5 // pred_region
        %s415 = ssub.s32 %s24, 1
        // Predicated region
        $region13: #{interaction_net.1} parent=11 // pred_check
          %p416 = pneg %p45
        $region14: #{interaction_net.1} parent=11 // pred_check_branch
          %418 = sbr.rel (%p416) target = $region16
        $region15: #{interaction_net.1} parent=11 // pred_region
          _
        $region16: #{interaction_net.1} parent=11 // pred_fallthru
          _
        // Predicated region
        $region17: #{interaction_net.1} parent=11 // pred_check
          %p419 = pneg %p66
        $region18: #{interaction_net.1} parent=11 // pred_check_branch
          %421 = sbr.rel (%p419) target = $region20
        $region19: #{interaction_net.1} parent=11 // pred_region
          _
        $region20: #{interaction_net.1} parent=11 // pred_fallthru
          _
        // Predicated region
        $region21: #{interaction_net.1} parent=11 // pred_check
          %p422 = pneg %p87
        $region22: #{interaction_net.1} parent=11 // pred_check_branch
          %424 = sbr.rel (%p422) target = $region24
        $region23: #{interaction_net.1} parent=11 // pred_region
          _
        $region24: #{interaction_net.1} parent=11 // pred_fallthru
          _
        // Predicated region
        $region25: #{interaction_net.1} parent=11 // pred_check
          %p425 = pneg %p212
        $region26: #{interaction_net.1} parent=11 // pred_check_branch
          %427 = sbr.rel (%p425) target = $region28
        $region27: #{interaction_net.1} parent=11 // pred_region
          _
        $region28: #{interaction_net.1} parent=11 // pred_fallthru
          _
        // Predicated region
        $region29: #{interaction_net.1} parent=11 // pred_check
          %p428 = pneg %p233
        $region30: #{interaction_net.1} parent=11 // pred_check_branch
          %430 = sbr.rel (%p428) target = $region32
        $region31: #{interaction_net.1} parent=11 // pred_region
          _
        $region32: #{interaction_net.1} parent=11 // pred_fallthru
          _
        // Predicated region
        $region33: #{interaction_net.1} parent=11 // pred_check
          %p431 = pneg %p254
        $region34: #{interaction_net.1} parent=11 // pred_check_branch
          %433 = sbr.rel (%p431) target = $region36
        $region35: #{interaction_net.1} parent=11 // pred_region
          _
        $region36: #{interaction_net.1} parent=11 // pred_fallthru
          _
        // Predicated region
        $region37: #{interaction_net.1} parent=11 // pred_check
          %p434 = pneg %p275
        $region38: #{interaction_net.1} parent=11 // pred_check_branch
          %436 = sbr.rel (%p434) target = $region40
        $region39: #{interaction_net.1} parent=11 // pred_region
          _
        $region40: #{interaction_net.1} parent=11 // pred_fallthru
          _
        // Predicated region
        $region41: #{interaction_net.1} parent=11 // pred_check
          %p437 = pneg %p296
        $region42: #{interaction_net.1} parent=11 // pred_check_branch
          %439 = sbr.rel (%p437) target = $region44
        $region43: #{interaction_net.1} parent=11 // pred_region
          _
        $region44: #{interaction_net.1} parent=11 // pred_fallthru
          _
        // Predicated region
        $region45: #{interaction_net.1} parent=11 // pred_check
          %p440 = pneg %p317
        $region46: #{interaction_net.1} parent=11 // pred_check_branch
          %442 = sbr.rel (%p440) target = $region48
        $region47: #{interaction_net.1} parent=11 // pred_region
          _
        $region48: #{interaction_net.1} parent=11 // pred_fallthru
          _
        // Predicated region
        $region49: #{interaction_net.1} parent=11 // pred_check
          %p443 = pneg %p338
        $region50: #{interaction_net.1} parent=11 // pred_check_branch
          %445 = sbr.rel (%p443) target = $region52
        $region51: #{interaction_net.1} parent=11 // pred_region
          _
        $region52: #{interaction_net.1} parent=11 // pred_fallthru
          _
        // Predicated region
        $region53: #{interaction_net.1} parent=11 // pred_check
          %p446 = pneg %p359
        $region54: #{interaction_net.1} parent=11 // pred_check_branch
          %448 = sbr.rel (%p446) target = $region56
        $region55: #{interaction_net.1} parent=11 // pred_region
          _
        $region56: #{interaction_net.1} parent=11 // pred_fallthru
          _
      $region12: #{interaction_net.1} parent=5 // pred_fallthru
        _
      %p449 = scmp.lt.s32.totalorder %s24, 2
      // Predicated region
      $region57: #{interaction_net.1} parent=5 // pred_check
        %p450 = pneg %p449
      $region58: #{interaction_net.1} parent=5 // pred_check_branch
        %452 = sbr.rel (%p450) target = $region60
      $region59: #{interaction_net.1} parent=5 // pred_region
        // Predicated region
        $region61: #{interaction_net.1} parent=59 // pred_check
          %p453 = pneg %p107
        $region62: #{interaction_net.1} parent=59 // pred_check_branch
          %455 = sbr.rel (%p453) target = $region64
        $region63: #{interaction_net.1} parent=59 // pred_region
          %s456 = smul.u32 4, %s24
          %p457 = scmp.lt.s32.totalorder %s456, 7
          %s458 = scalar_select %p457, %s456, 7
          %s459 = smul.addr %s458, 8
          %s460 = scalar_lea.vmem %s3, %s459
          %s461 = smul.u32 4, %s24
        $region64: #{interaction_net.1} parent=59 // pred_fallthru
          _
        // Predicated region
        $region65: #{interaction_net.1} parent=59 // pred_check
          %p462 = pneg %p133
        $region66: #{interaction_net.1} parent=59 // pred_check_branch
          %464 = sbr.rel (%p462) target = $region68
        $region67: #{interaction_net.1} parent=59 // pred_region
          %s465 = smul.u32 4, %s24
          %p466 = scmp.lt.s32.totalorder %s465, 7
          %s467 = scalar_select %p466, %s465, 7
          %s468 = smul.addr %s467, 8
          %s469 = scalar_lea.vmem %s4, %s468
          %s470 = smul.u32 4, %s24
        $region68: #{interaction_net.1} parent=59 // pred_fallthru
          _
        // Predicated region
        $region69: #{interaction_net.1} parent=59 // pred_check
          %p471 = pneg %p159
        $region70: #{interaction_net.1} parent=59 // pred_check_branch
          %473 = sbr.rel (%p471) target = $region72
        $region71: #{interaction_net.1} parent=59 // pred_region
          %s474 = smul.u32 4, %s24
          %p475 = scmp.lt.s32.totalorder %s474, 7
          %s476 = scalar_select %p475, %s474, 7
          %s477 = smul.addr %s476, 8
          %s478 = scalar_lea.vmem %s5, %s477
          %s479 = smul.u32 4, %s24
        $region72: #{interaction_net.1} parent=59 // pred_fallthru
          _
        // Predicated region
        $region73: #{interaction_net.1} parent=59 // pred_check
          %p480 = pneg %p185
        $region74: #{interaction_net.1} parent=59 // pred_check_branch
          %482 = sbr.rel (%p480) target = $region76
        $region75: #{interaction_net.1} parent=59 // pred_region
          %s483 = smul.u32 4, %s24
          %p484 = scmp.lt.s32.totalorder %s483, 7
          %s485 = scalar_select %p484, %s483, 7
          %s486 = smul.addr %s485, 4
          %s487 = scalar_lea.vmem %s6, %s486
          %s488 = smul.u32 4, %s24
        $region76: #{interaction_net.1} parent=59 // pred_fallthru
          _
      $region60: #{interaction_net.1} parent=5 // pred_fallthru
        _
      %p489 = scmp.le.s32.totalorder 1, %s24
      %p490 = scmp.lt.s32.totalorder %s24, 3
      %p491 = pnand %p489, %p490
      %p492 = pneg %p491
      // Predicated region
      $region77: #{interaction_net.1} parent=5 // pred_check
        _
      $region78: #{interaction_net.1} parent=5 // pred_check_branch
        %494 = sbr.rel (%p491) target = $region80
      $region79: #{interaction_net.1} parent=5 // pred_region
        %s495 = ssub.s32 %s24, 1
        %p496 = pneg %p45
        %p497 = pneg %p42
        %p498 = pneg %p66
        %p499 = pneg %p63
        %p500 = pneg %p87
        %p501 = pneg %p84
        %s502 = smul.u32 4, %s29
        %p503 = scmp.lt.s32.totalorder %s502, 7
        %s504 = scalar_select %p503, %s502, 7
        %s505 = smul.addr %s504, 8
        %s506 = scalar_lea.vmem %s3, %s505
        %p507 = pneg %p113
        %p508 = pneg %p110
        %s509 = smul.u32 4, %s29
        %p510 = scmp.lt.s32.totalorder %s509, 7
        %s511 = scalar_select %p510, %s509, 7
        %s512 = smul.addr %s511, 8
        %s513 = scalar_lea.vmem %s4, %s512
        %p514 = pneg %p139
        %p515 = pneg %p136
        %s516 = smul.u32 4, %s29
        %p517 = scmp.lt.s32.totalorder %s516, 7
        %s518 = scalar_select %p517, %s516, 7
        %s519 = smul.addr %s518, 8
        %s520 = scalar_lea.vmem %s5, %s519
        %p521 = pneg %p165
        %p522 = pneg %p162
        %s523 = smul.u32 4, %s29
        %p524 = scmp.lt.s32.totalorder %s523, 7
        %s525 = scalar_select %p524, %s523, 7
        %s526 = smul.addr %s525, 4
        %s527 = scalar_lea.vmem %s6, %s526
        %p528 = pneg %p191
        %p529 = pneg %p188
        %p530 = pneg %p212
        %p531 = pneg %p209
        %p532 = pneg %p233
        %p533 = pneg %p230
        %p534 = pneg %p254
        %p535 = pneg %p251
        %p536 = pneg %p275
        %p537 = pneg %p272
        %p538 = pneg %p296
        %p539 = pneg %p293
        %p540 = pneg %p317
        %p541 = pneg %p314
        %p542 = pneg %p338
        %p543 = pneg %p335
        %p544 = pneg %p359
        %p545 = pneg %p356
        %p546 = pneg %p380
        %p547 = pneg %p377
        %p548 = pneg %p401
        %p549 = pneg %p398
        %s550 = smul.u32 4, %s29
        %p551 = scmp.lt.s32.totalorder %s550, 7
        %s552 = scalar_select %p551, %s550, 7
        %s553 = smul.addr %s552, 8
        %s554 = scalar_lea.vmem %s3, %s553
        %s555 = smul.u32 4, %s29
        %s556 = smul.u32 4, %s29
        %p557 = scmp.lt.s32.totalorder %s556, 7
        %s558 = scalar_select %p557, %s556, 7
        %s559 = smul.addr %s558, 8
        %s560 = scalar_lea.vmem %s4, %s559
        %s561 = smul.u32 4, %s29
        %s562 = smul.u32 4, %s29
        %p563 = scmp.lt.s32.totalorder %s562, 7
        %s564 = scalar_select %p563, %s562, 7
        %s565 = smul.addr %s564, 8
        %s566 = scalar_lea.vmem %s5, %s565
        %s567 = smul.u32 4, %s29
        %s568 = smul.u32 4, %s29
        %p569 = scmp.lt.s32.totalorder %s568, 7
        %s570 = scalar_select %p569, %s568, 7
        %s571 = smul.addr %s570, 4
        %s572 = scalar_lea.vmem %s6, %s571
        %s573 = smul.u32 4, %s29
        %p575 = scmp.eq.s32.totalorder %s29, 0
        // Predicated region
        $region81: #{interaction_net.1} parent=79 // pred_check
          %p576 = pneg %p575
        $region82: #{interaction_net.1} parent=79 // pred_check_branch
          %578 = sbr.rel (%p576) target = $region84
        $region83: #{interaction_net.1} parent=79 // pred_region
          %579 = vst [vmem:[#allocation2] sm:$0xff] 0.0
          %580 = vst [vmem:[#allocation2 + $0x8] sm:$0xff] 0.0
          %581 = vst [vmem:[#allocation2 + $0x10] sm:$0xff] 0.0
          %582 = vst [vmem:[#allocation2 + $0x18] sm:$0xff] 0.0
          %583 = vst [vmem:[#allocation2 + $0x20] sm:$0xff] 0.0
          %584 = vst [vmem:[#allocation2 + $0x28] sm:$0xff] 0.0
          %585 = vst [vmem:[#allocation2 + $0x30] sm:$0xff] 0.0
          %586 = vst [vmem:[#allocation2 + $0x38] sm:$0xff] 0.0
        $region84: #{interaction_net.1} parent=79 // pred_fallthru
          _
        %v587 = vlaneseq
        %v588 = vand.u32 %v587, 127
        %v589 = vld [vmem:[%s554] sm:$0xff]
        %v590 = vld [vmem:[%s554 + $0x8] sm:$0xff]
        %v591 = vld [vmem:[%s554 + $0x10] sm:$0xff]
        %v592 = vld [vmem:[%s554 + $0x18] sm:$0xff]
        %593 = vset.pattern.permute.xlu0 0
        %594 = vperm.xlu0 %593, %v589
        %v595 = vpop.permute.xlu0 %594
        %596 = vset.pattern.permute.xlu0 0
        %597 = vperm.xlu0 %596, %v590
        %v598 = vpop.permute.xlu0 %597
        %599 = vset.pattern.permute.xlu0 0
        %600 = vperm.xlu0 %599, %v591
        %v601 = vpop.permute.xlu0 %600
        %602 = vset.pattern.permute.xlu0 0
        %603 = vperm.xlu0 %602, %v592
        %v604 = vpop.permute.xlu0 %603
        %vm605 = vcmp.eq.s32.totalorder %v588, %v595
        %vm606 = vcmp.eq.s32.totalorder %v588, %v598
        %vm607 = vcmp.eq.s32.totalorder %v588, %v601
        %vm608 = vcmp.eq.s32.totalorder %v588, %v604
        %v609 = vsel %vm605, 1, 0
        %v610 = vsel %vm606, 1, 0
        %v611 = vsel %vm607, 1, 0
        %v612 = vsel %vm608, 1, 0
        %v613 = vcvt.s32.f32 %v609
        %v614 = vcvt.s32.f32 %v610
        %v615 = vcvt.s32.f32 %v611
        %v616 = vcvt.s32.f32 %v612
        %v617 = vpack.c.bf16 %v614, %v613
        %v618 = vpack.c.bf16 %v616, %v615
        %v619 = vld [vmem:[%s560] sm:$0xff]
        %v620 = vld [vmem:[%s560 + $0x8] sm:$0xff]
        %v621 = vld [vmem:[%s560 + $0x10] sm:$0xff]
        %v622 = vld [vmem:[%s560 + $0x18] sm:$0xff]
        %623 = vset.pattern.permute.xlu0 0
        %624 = vperm.xlu0 %623, %v619
        %v625 = vpop.permute.xlu0 %624
        %626 = vset.pattern.permute.xlu0 0
        %627 = vperm.xlu0 %626, %v620
        %v628 = vpop.permute.xlu0 %627
        %629 = vset.pattern.permute.xlu0 0
        %630 = vperm.xlu0 %629, %v621
        %v631 = vpop.permute.xlu0 %630
        %632 = vset.pattern.permute.xlu0 0
        %633 = vperm.xlu0 %632, %v622
        %v634 = vpop.permute.xlu0 %633
        %vm635 = vcmp.eq.s32.totalorder %v588, %v625
        %vm636 = vcmp.eq.s32.totalorder %v588, %v628
        %vm637 = vcmp.eq.s32.totalorder %v588, %v631
        %vm638 = vcmp.eq.s32.totalorder %v588, %v634
        %v639 = vsel %vm635, 1, 0
        %v640 = vsel %vm636, 1, 0
        %v641 = vsel %vm637, 1, 0
        %v642 = vsel %vm638, 1, 0
        %v643 = vcvt.s32.f32 %v639
        %v644 = vcvt.s32.f32 %v640
        %v645 = vcvt.s32.f32 %v641
        %v646 = vcvt.s32.f32 %v642
        %v647 = vpack.c.bf16 %v644, %v643
        %v648 = vpack.c.bf16 %v646, %v645
        %v649 = vld [vmem:[%s0] sm:$0xff]
        %v650 = vld [vmem:[%s0 + $0x8] sm:$0xff]
        %v651 = vld [vmem:[%s0 + $0x10] sm:$0xff]
        %v652 = vld [vmem:[%s0 + $0x18] sm:$0xff]
        %v653 = vld [vmem:[%s572] sm:$0xf]
        %v654 = vld [vmem:[%s572 + $0x4] sm:$0xf]
        %v655 = vld [vmem:[%s572 + $0x8] sm:$0xf]
        %v656 = vld [vmem:[%s572 + $0xc] sm:$0xf]
        %v657 = vld [vmem:[%s7] sm:$0xf]
        %v658 = vld [vmem:[%s7 + $0x4] sm:$0xf]
        %v663 = vunpack.c.l.b16 %v653
        %v664 = vunpack.c.l.b16 %v654
        %v665 = vunpack.c.l.b16 %v655
        %v666 = vunpack.c.l.b16 %v656
        %v667 = vpack.c.b16 %v664, %v663
        %v668 = vpack.c.b16 %v666, %v665
        %v671 = vunpack.c.l.b16 %v657
        %v672 = vunpack.c.l.b16 %v658
        %v673 = vpack.c.b16 %v672, %v671
        %vm675 = vcmask 130048
        %v677 = vsel %vm675, %v667, 0
        %v680 = vsel %vm675, %v668, 0
        %682 = vmatprep.subr.bf16.mxu0 0
        %683 = vmatpush1.bf16.msra.mxu0 %v673
        %684 = vmatprep.subr.bf16.mxu0 0
        %685 = vmatpush1.bf16.msra.mxu0 0
        %686 = vmatprep.subr.bf16.mxu0 0
        %687 = vmatpush1.bf16.msra.mxu0 0
        %688 = vmatprep.subr.bf16.mxu0 0
        %689 = vmatpush1.bf16.msra.mxu0 0
        %690 = vmatprep.subr.bf16.mxu0 0
        %691 = vmatpush1.bf16.msra.mxu0 0
        %692 = vmatprep.subr.bf16.mxu0 0
        %693 = vmatpush1.bf16.msra.mxu0 0
        %694 = vmatprep.subr.bf16.mxu0 0
        %695 = vmatpush1.bf16.msra.mxu0 0
        %696 = vmatprep.subr.bf16.mxu0 0
        %697 = vmatpush1.bf16.msra.mxu0 0
        %698 = vmatprep.subr.bf16.mxu0 0
        %699 = vmatpush1.bf16.msra.mxu0 0
        %700 = vmatprep.subr.bf16.mxu0 0
        %701 = vmatpush1.bf16.msra.mxu0 0
        %702 = vmatprep.subr.bf16.mxu0 0
        %703 = vmatpush1.bf16.msra.mxu0 0
        %704 = vmatprep.subr.bf16.mxu0 0
        %705 = vmatpush1.bf16.msra.mxu0 0
        %706 = vmatprep.subr.bf16.mxu0 0
        %707 = vmatpush1.bf16.msra.mxu0 0
        %708 = vmatprep.subr.bf16.mxu0 0
        %709 = vmatpush1.bf16.msra.mxu0 0
        %710 = vmatprep.subr.bf16.mxu0 0
        %711 = vmatpush1.bf16.msra.mxu0 0
        %712 = vmatprep.subr.bf16.mxu0 0
        %713 = vmatpush1.bf16.msra.mxu0 0
        %714 = vmatprep.mubr.bf16.mxu0 0
        %715 = vmatmul.mubr.bf16.gmra.mrb[0].mxu0 %v677
        %v716 = vpop.f32.mrb[0].mxu0
        %v717 = vadd.f32 0.0, %v716
        %v718 = vpop.f32.mrb[0].mxu0
        %v719 = vpop.f32.mrb[0].mxu0
        %v720 = vadd.f32 0.0, %v719
        %v721 = vpop.f32.mrb[0].mxu0
        %722 = vmatprep.mubr.bf16.mxu0 0
        %723 = vmatmul.mubr.bf16.gmra.mrb[0].mxu0 %v680
        %v724 = vpop.f32.mrb[0].mxu0
        %v725 = vadd.f32 0.0, %v724
        %v726 = vpop.f32.mrb[0].mxu0
        %v727 = vpop.f32.mrb[0].mxu0
        %v728 = vadd.f32 0.0, %v727
        %v729 = vpop.f32.mrb[0].mxu0
        %730 = vdwg.mxu0
        %v733 = vunpack.c.l.b16 %v649
        %v734 = vunpack.c.l.b16 %v651
        %v735 = vpack.c.b16 %v734, %v733
        %v738 = vsel %vm675, %v617, 0
        %v741 = vsel %vm675, %v618, 0
        %743 = vmatprep.subr.bf16.mxu0 0
        %744 = vmatpush1.bf16.msra.mxu0 %v735
        %745 = vmatprep.subr.bf16.mxu0 0
        %746 = vmatpush1.bf16.msra.mxu0 0
        %747 = vmatprep.subr.bf16.mxu0 0
        %748 = vmatpush1.bf16.msra.mxu0 0
        %749 = vmatprep.subr.bf16.mxu0 0
        %750 = vmatpush1.bf16.msra.mxu0 0
        %751 = vmatprep.subr.bf16.mxu0 0
        %752 = vmatpush1.bf16.msra.mxu0 0
        %753 = vmatprep.subr.bf16.mxu0 0
        %754 = vmatpush1.bf16.msra.mxu0 0
        %755 = vmatprep.subr.bf16.mxu0 0
        %756 = vmatpush1.bf16.msra.mxu0 0
        %757 = vmatprep.subr.bf16.mxu0 0
        %758 = vmatpush1.bf16.msra.mxu0 0
        %759 = vmatprep.subr.bf16.mxu0 0
        %760 = vmatpush1.bf16.msra.mxu0 0
        %761 = vmatprep.subr.bf16.mxu0 0
        %762 = vmatpush1.bf16.msra.mxu0 0
        %763 = vmatprep.subr.bf16.mxu0 0
        %764 = vmatpush1.bf16.msra.mxu0 0
        %765 = vmatprep.subr.bf16.mxu0 0
        %766 = vmatpush1.bf16.msra.mxu0 0
        %767 = vmatprep.subr.bf16.mxu0 0
        %768 = vmatpush1.bf16.msra.mxu0 0
        %769 = vmatprep.subr.bf16.mxu0 0
        %770 = vmatpush1.bf16.msra.mxu0 0
        %771 = vmatprep.subr.bf16.mxu0 0
        %772 = vmatpush1.bf16.msra.mxu0 0
        %773 = vmatprep.subr.bf16.mxu0 0
        %774 = vmatpush1.bf16.msra.mxu0 0
        %775 = vmatprep.mubr.bf16.mxu0 0
        %776 = vmatmul.mubr.bf16.gmra.mrb[0].mxu0 %v738
        %v777 = vpop.f32.mrb[0].mxu0
        %v778 = vadd.f32 0.0, %v777
        %v779 = vpop.f32.mrb[0].mxu0
        %v780 = vpop.f32.mrb[0].mxu0
        %v781 = vadd.f32 0.0, %v780
        %v782 = vpop.f32.mrb[0].mxu0
        %783 = vmatprep.mubr.bf16.mxu0 0
        %784 = vmatmul.mubr.bf16.gmra.mrb[0].mxu0 %v741
        %v785 = vpop.f32.mrb[0].mxu0
        %v786 = vadd.f32 0.0, %v785
        %v787 = vpop.f32.mrb[0].mxu0
        %v788 = vpop.f32.mrb[0].mxu0
        %v789 = vadd.f32 0.0, %v788
        %v790 = vpop.f32.mrb[0].mxu0
        %791 = vdwg.mxu0
        %v794 = vunpack.c.h.b16 %v649
        %v795 = vunpack.c.l.b16 %v650
        %v796 = vunpack.c.h.b16 %v650
        %v797 = vunpack.c.h.b16 %v651
        %v798 = vunpack.c.l.b16 %v652
        %v799 = vunpack.c.h.b16 %v652
        %v800 = vpack.c.b16 %v797, %v794
        %v801 = vpack.c.b16 %v798, %v795
        %v802 = vpack.c.b16 %v799, %v796
        %v807 = vsel %vm675, %v647, 0
        %v810 = vsel %vm675, %v648, 0
        %812 = vmatprep.subr.bf16.mxu0 %v800
        %813 = vmatpush1.bf16.msra.mxu0 %v735
        %814 = vmatprep.subr.bf16.mxu0 0
        %815 = vmatpush1.bf16.msra.mxu0 0
        %816 = vmatprep.subr.bf16.mxu0 0
        %817 = vmatpush1.bf16.msra.mxu0 0
        %818 = vmatprep.subr.bf16.mxu0 0
        %819 = vmatpush1.bf16.msra.mxu0 0
        %820 = vmatprep.subr.bf16.mxu0 0
        %821 = vmatpush1.bf16.msra.mxu0 0
        %822 = vmatprep.subr.bf16.mxu0 0
        %823 = vmatpush1.bf16.msra.mxu0 0
        %824 = vmatprep.subr.bf16.mxu0 0
        %825 = vmatpush1.bf16.msra.mxu0 0
        %826 = vmatprep.subr.bf16.mxu0 0
        %827 = vmatpush1.bf16.msra.mxu0 0
        %828 = vmatprep.subr.bf16.mxu0 0
        %829 = vmatpush1.bf16.msra.mxu0 0
        %830 = vmatprep.subr.bf16.mxu0 0
        %831 = vmatpush1.bf16.msra.mxu0 0
        %832 = vmatprep.subr.bf16.mxu0 0
        %833 = vmatpush1.bf16.msra.mxu0 0
        %834 = vmatprep.subr.bf16.mxu0 0
        %835 = vmatpush1.bf16.msra.mxu0 0
        %836 = vmatprep.subr.bf16.mxu0 0
        %837 = vmatpush1.bf16.msra.mxu0 0
        %838 = vmatprep.subr.bf16.mxu0 0
        %839 = vmatpush1.bf16.msra.mxu0 0
        %840 = vmatprep.subr.bf16.mxu0 0
        %841 = vmatpush1.bf16.msra.mxu0 0
        %842 = vmatprep.subr.bf16.mxu0 0
        %843 = vmatpush1.bf16.msra.mxu0 0
        %844 = vmatprep.mubr.bf16.mxu0 0
        %845 = vmatmul.mubr.bf16.gmra.mrb[0].mxu0 %v807
        %v846 = vpop.f32.mrb[0].mxu0
        %v847 = vadd.f32 0.0, %v846
        %v848 = vpop.f32.mrb[0].mxu0
        %v849 = vadd.f32 0.0, %v848
        %v850 = vpop.f32.mrb[0].mxu0
        %v851 = vadd.f32 0.0, %v850
        %v852 = vpop.f32.mrb[0].mxu0
        %v853 = vadd.f32 0.0, %v852
        %854 = vmatprep.mubr.bf16.mxu0 0
        %855 = vmatmul.mubr.bf16.gmra.mrb[0].mxu0 %v810
        %v856 = vpop.f32.mrb[0].mxu0
        %v857 = vadd.f32 0.0, %v856
        %v858 = vpop.f32.mrb[0].mxu0
        %v859 = vadd.f32 0.0, %v858
        %v860 = vpop.f32.mrb[0].mxu0
        %v861 = vadd.f32 0.0, %v860
        %v862 = vpop.f32.mrb[0].mxu0
        %v863 = vadd.f32 0.0, %v862
        %864 = vdwg.mxu0
        %865 = vmatprep.subr.bf16.mxu0 %v802
        %866 = vmatpush1.bf16.msra.mxu0 %v801
        %867 = vmatprep.subr.bf16.mxu0 0
        %868 = vmatpush1.bf16.msra.mxu0 0
        %869 = vmatprep.subr.bf16.mxu0 0
        %870 = vmatpush1.bf16.msra.mxu0 0
        %871 = vmatprep.subr.bf16.mxu0 0
        %872 = vmatpush1.bf16.msra.mxu0 0
        %873 = vmatprep.subr.bf16.mxu0 0
        %874 = vmatpush1.bf16.msra.mxu0 0
        %875 = vmatprep.subr.bf16.mxu0 0
        %876 = vmatpush1.bf16.msra.mxu0 0
        %877 = vmatprep.subr.bf16.mxu0 0
        %878 = vmatpush1.bf16.msra.mxu0 0
        %879 = vmatprep.subr.bf16.mxu0 0
        %880 = vmatpush1.bf16.msra.mxu0 0
        %881 = vmatprep.subr.bf16.mxu0 0
        %882 = vmatpush1.bf16.msra.mxu0 0
        %883 = vmatprep.subr.bf16.mxu0 0
        %884 = vmatpush1.bf16.msra.mxu0 0
        %885 = vmatprep.subr.bf16.mxu0 0
        %886 = vmatpush1.bf16.msra.mxu0 0
        %887 = vmatprep.subr.bf16.mxu0 0
        %888 = vmatpush1.bf16.msra.mxu0 0
        %889 = vmatprep.subr.bf16.mxu0 0
        %890 = vmatpush1.bf16.msra.mxu0 0
        %891 = vmatprep.subr.bf16.mxu0 0
        %892 = vmatpush1.bf16.msra.mxu0 0
        %893 = vmatprep.subr.bf16.mxu0 0
        %894 = vmatpush1.bf16.msra.mxu0 0
        %895 = vmatprep.subr.bf16.mxu0 0
        %896 = vmatpush1.bf16.msra.mxu0 0
        %897 = vmatprep.mubr.bf16.mxu0 0
        %898 = vmatmul.mubr.bf16.gmra.mrb[0].mxu0 %v807
        %v899 = vpop.f32.mrb[0].mxu0
        %v900 = vadd.f32 0.0, %v899
        %v901 = vpop.f32.mrb[0].mxu0
        %v902 = vadd.f32 0.0, %v901
        %v903 = vpop.f32.mrb[0].mxu0
        %v904 = vadd.f32 0.0, %v903
        %v905 = vpop.f32.mrb[0].mxu0
        %v906 = vadd.f32 0.0, %v905
        %907 = vmatprep.mubr.bf16.mxu0 0
        %908 = vmatmul.mubr.bf16.gmra.mrb[0].mxu0 %v810
        %v909 = vpop.f32.mrb[0].mxu0
        %v910 = vadd.f32 0.0, %v909
        %v911 = vpop.f32.mrb[0].mxu0
        %v912 = vadd.f32 0.0, %v911
        %v913 = vpop.f32.mrb[0].mxu0
        %v914 = vadd.f32 0.0, %v913
        %v915 = vpop.f32.mrb[0].mxu0
        %v916 = vadd.f32 0.0, %v915
        %917 = vdwg.mxu0
        %v918 = vmul.f32 %v717, %v778
        %v919 = vmul.f32 %v720, %v781
        %v920 = vmul.f32 %v725, %v786
        %v921 = vmul.f32 %v728, %v789
        %v922 = vmul.f32 %v918, %v847
        %v923 = vmul.f32 %v919, %v851
        %v924 = vmul.f32 %v920, %v857
        %v925 = vmul.f32 %v921, %v861
        %v926 = vpack.c.bf16 %v923, %v922
        %v927 = vpack.c.bf16 %v925, %v924
        %v928 = vld [vmem:[%s8] sm:$0xf]
        %v929 = vld [vmem:[%s8 + $0x4] sm:$0xf]
        %v930 = vld [vmem:[%s8 + $0x8] sm:$0xf]
        %v931 = vld [vmem:[%s8 + $0xc] sm:$0xf]
        %v932 = vld [vmem:[%s8 + $0x10] sm:$0xf]
        %v933 = vld [vmem:[%s8 + $0x14] sm:$0xf]
        %v934 = vld [vmem:[%s8 + $0x18] sm:$0xf]
        %v935 = vld [vmem:[%s8 + $0x1c] sm:$0xf]
        %v936 = vld [vmem:[%s8 + $0x20] sm:$0xf]
        %v937 = vld [vmem:[%s8 + $0x24] sm:$0xf]
        %v938 = vld [vmem:[%s8 + $0x28] sm:$0xf]
        %v939 = vld [vmem:[%s8 + $0x2c] sm:$0xf]
        %v940 = vld [vmem:[%s8 + $0x30] sm:$0xf]
        %v941 = vld [vmem:[%s8 + $0x34] sm:$0xf]
        %v942 = vld [vmem:[%s8 + $0x38] sm:$0xf]
        %v943 = vld [vmem:[%s8 + $0x3c] sm:$0xf]
        %v960 = vunpack.c.l.b16 %v928
        %v961 = vunpack.c.l.b16 %v929
        %v962 = vunpack.c.l.b16 %v930
        %v963 = vunpack.c.l.b16 %v931
        %v964 = vunpack.c.l.b16 %v932
        %v965 = vunpack.c.l.b16 %v933
        %v966 = vunpack.c.l.b16 %v934
        %v967 = vunpack.c.l.b16 %v935
        %v968 = vunpack.c.l.b16 %v936
        %v969 = vunpack.c.l.b16 %v937
        %v970 = vunpack.c.l.b16 %v938
        %v971 = vunpack.c.l.b16 %v939
        %v972 = vunpack.c.l.b16 %v940
        %v973 = vunpack.c.l.b16 %v941
        %v974 = vunpack.c.l.b16 %v942
        %v975 = vunpack.c.l.b16 %v943
        %v976 = vpack.c.b16 %v961, %v960
        %v977 = vpack.c.b16 %v963, %v962
        %v978 = vpack.c.b16 %v965, %v964
        %v979 = vpack.c.b16 %v967, %v966
        %v980 = vpack.c.b16 %v969, %v968
        %v981 = vpack.c.b16 %v971, %v970
        %v982 = vpack.c.b16 %v973, %v972
        %v983 = vpack.c.b16 %v975, %v974
        %992 = vmatprep.subr.bf16.mxu0 0
        %993 = vmatpush1.bf16.msra.mxu0 %v976
        %994 = vmatprep.subr.bf16.mxu0 0
        %995 = vmatpush1.bf16.msra.mxu0 %v977
        %996 = vmatprep.subr.bf16.mxu0 0
        %997 = vmatpush1.bf16.msra.mxu0 %v978
        %998 = vmatprep.subr.bf16.mxu0 0
        %999 = vmatpush1.bf16.msra.mxu0 %v979
        %1000 = vmatprep.subr.bf16.mxu0 0
        %1001 = vmatpush1.bf16.msra.mxu0 %v980
        %1002 = vmatprep.subr.bf16.mxu0 0
        %1003 = vmatpush1.bf16.msra.mxu0 %v981
        %1004 = vmatprep.subr.bf16.mxu0 0
        %1005 = vmatpush1.bf16.msra.mxu0 %v982
        %1006 = vmatprep.subr.bf16.mxu0 0
        %1007 = vmatpush1.bf16.msra.mxu0 %v983
        %1008 = vmatprep.subr.bf16.mxu0 0
        %1009 = vmatpush1.bf16.msra.mxu0 0
        %1010 = vmatprep.subr.bf16.mxu0 0
        %1011 = vmatpush1.bf16.msra.mxu0 0
        %1012 = vmatprep.subr.bf16.mxu0 0
        %1013 = vmatpush1.bf16.msra.mxu0 0
        %1014 = vmatprep.subr.bf16.mxu0 0
        %1015 = vmatpush1.bf16.msra.mxu0 0
        %1016 = vmatprep.subr.bf16.mxu0 0
        %1017 = vmatpush1.bf16.msra.mxu0 0
        %1018 = vmatprep.subr.bf16.mxu0 0
        %1019 = vmatpush1.bf16.msra.mxu0 0
        %1020 = vmatprep.subr.bf16.mxu0 0
        %1021 = vmatpush1.bf16.msra.mxu0 0
        %1022 = vmatprep.subr.bf16.mxu0 0
        %1023 = vmatpush1.bf16.msra.mxu0 0
        %1024 = vmatprep.mubr.bf16.mxu0 0
        %1025 = vmatmul.mubr.bf16.gmra.mrb[0].mxu0 %v926
        %v1026 = vpop.f32.mrb[0].mxu0
        %v1027 = vadd.f32 0.0, %v1026
        %v1028 = vpop.f32.mrb[0].mxu0
        %v1029 = vpop.f32.mrb[0].mxu0
        %v1030 = vadd.f32 0.0, %v1029
        %v1031 = vpop.f32.mrb[0].mxu0
        %1032 = vmatprep.mubr.bf16.mxu0 0
        %1033 = vmatmul.mubr.bf16.gmra.mrb[0].mxu0 %v927
        %v1034 = vpop.f32.mrb[0].mxu0
        %v1035 = vadd.f32 0.0, %v1034
        %v1036 = vpop.f32.mrb[0].mxu0
        %v1037 = vpop.f32.mrb[0].mxu0
        %v1038 = vadd.f32 0.0, %v1037
        %v1039 = vpop.f32.mrb[0].mxu0
        %1040 = vdwg.mxu0
        %v1041 = vxor.u32 %v1027, 2147483648
        %v1042 = vxor.u32 %v1030, 2147483648
        %v1043 = vxor.u32 %v1035, 2147483648
        %v1044 = vxor.u32 %v1038, 2147483648
        %v1045 = vmul.f32 %v1041, 1.442695
        %v1046 = vpow.pop %v1045
        %v1047 = vmul.f32 %v1042, 1.442695
        %v1048 = vpow.pop %v1047
        %v1049 = vmul.f32 %v1043, 1.442695
        %v1050 = vpow.pop %v1049
        %v1051 = vmul.f32 %v1044, 1.442695
        %v1052 = vpow.pop %v1051
        %v1053 = vadd.f32 %v1046, 1.0
        %v1054 = vadd.f32 %v1048, 1.0
        %v1055 = vadd.f32 %v1050, 1.0
        %v1056 = vadd.f32 %v1052, 1.0
        %v1057 = vrcp.pop %v1053
        %v1058 = vmul.f32 1.0, %v1057
        %v1059 = vrcp.pop %v1054
        %v1060 = vmul.f32 1.0, %v1059
        %v1061 = vrcp.pop %v1055
        %v1062 = vmul.f32 1.0, %v1061
        %v1063 = vrcp.pop %v1056
        %v1064 = vmul.f32 1.0, %v1063
        %v1065 = vmul.f32 %v1027, %v1058
        %v1066 = vmul.f32 %v1030, %v1060
        %v1067 = vmul.f32 %v1035, %v1062
        %v1068 = vmul.f32 %v1038, %v1064
        %v1069 = vpack.c.bf16 %v1066, %v1065
        %v1070 = vpack.c.bf16 %v1068, %v1067
        %v1071 = vld [vmem:[%s9] sm:$0xf]
        %v1072 = vld [vmem:[%s9 + $0x4] sm:$0xf]
        %v1073 = vld [vmem:[%s9 + $0x8] sm:$0xf]
        %v1074 = vld [vmem:[%s9 + $0xc] sm:$0xf]
        %v1075 = vld [vmem:[%s9 + $0x10] sm:$0xf]
        %v1076 = vld [vmem:[%s9 + $0x14] sm:$0xf]
        %v1077 = vld [vmem:[%s9 + $0x18] sm:$0xf]
        %v1078 = vld [vmem:[%s9 + $0x1c] sm:$0xf]
        %v1079 = vld [vmem:[%s9 + $0x20] sm:$0xf]
        %v1080 = vld [vmem:[%s9 + $0x24] sm:$0xf]
        %v1081 = vld [vmem:[%s9 + $0x28] sm:$0xf]
        %v1082 = vld [vmem:[%s9 + $0x2c] sm:$0xf]
        %v1083 = vld [vmem:[%s9 + $0x30] sm:$0xf]
        %v1084 = vld [vmem:[%s9 + $0x34] sm:$0xf]
        %v1085 = vld [vmem:[%s9 + $0x38] sm:$0xf]
        %v1086 = vld [vmem:[%s9 + $0x3c] sm:$0xf]
        %v1103 = vunpack.c.l.b16 %v1071
        %v1104 = vunpack.c.l.b16 %v1072
        %v1105 = vunpack.c.l.b16 %v1073
        %v1106 = vunpack.c.l.b16 %v1074
        %v1107 = vunpack.c.l.b16 %v1075
        %v1108 = vunpack.c.l.b16 %v1076
        %v1109 = vunpack.c.l.b16 %v1077
        %v1110 = vunpack.c.l.b16 %v1078
        %v1111 = vunpack.c.l.b16 %v1079
        %v1112 = vunpack.c.l.b16 %v1080
        %v1113 = vunpack.c.l.b16 %v1081
        %v1114 = vunpack.c.l.b16 %v1082
        %v1115 = vunpack.c.l.b16 %v1083
        %v1116 = vunpack.c.l.b16 %v1084
        %v1117 = vunpack.c.l.b16 %v1085
        %v1118 = vunpack.c.l.b16 %v1086
        %v1119 = vpack.c.b16 %v1104, %v1103
        %v1120 = vpack.c.b16 %v1106, %v1105
        %v1121 = vpack.c.b16 %v1108, %v1107
        %v1122 = vpack.c.b16 %v1110, %v1109
        %v1123 = vpack.c.b16 %v1112, %v1111
        %v1124 = vpack.c.b16 %v1114, %v1113
        %v1125 = vpack.c.b16 %v1116, %v1115
        %v1126 = vpack.c.b16 %v1118, %v1117
        %1135 = vmatprep.subr.bf16.mxu0 0
        %1136 = vmatpush1.bf16.msra.mxu0 %v1119
        %1137 = vmatprep.subr.bf16.mxu0 0
        %1138 = vmatpush1.bf16.msra.mxu0 %v1120
        %1139 = vmatprep.subr.bf16.mxu0 0
        %1140 = vmatpush1.bf16.msra.mxu0 %v1121
        %1141 = vmatprep.subr.bf16.mxu0 0
        %1142 = vmatpush1.bf16.msra.mxu0 %v1122
        %1143 = vmatprep.subr.bf16.mxu0 0
        %1144 = vmatpush1.bf16.msra.mxu0 %v1123
        %1145 = vmatprep.subr.bf16.mxu0 0
        %1146 = vmatpush1.bf16.msra.mxu0 %v1124
        %1147 = vmatprep.subr.bf16.mxu0 0
        %1148 = vmatpush1.bf16.msra.mxu0 %v1125
        %1149 = vmatprep.subr.bf16.mxu0 0
        %1150 = vmatpush1.bf16.msra.mxu0 %v1126
        %1151 = vmatprep.subr.bf16.mxu0 0
        %1152 = vmatpush1.bf16.msra.mxu0 0
        %1153 = vmatprep.subr.bf16.mxu0 0
        %1154 = vmatpush1.bf16.msra.mxu0 0
        %1155 = vmatprep.subr.bf16.mxu0 0
        %1156 = vmatpush1.bf16.msra.mxu0 0
        %1157 = vmatprep.subr.bf16.mxu0 0
        %1158 = vmatpush1.bf16.msra.mxu0 0
        %1159 = vmatprep.subr.bf16.mxu0 0
        %1160 = vmatpush1.bf16.msra.mxu0 0
        %1161 = vmatprep.subr.bf16.mxu0 0
        %1162 = vmatpush1.bf16.msra.mxu0 0
        %1163 = vmatprep.subr.bf16.mxu0 0
        %1164 = vmatpush1.bf16.msra.mxu0 0
        %1165 = vmatprep.subr.bf16.mxu0 0
        %1166 = vmatpush1.bf16.msra.mxu0 0
        %1167 = vmatprep.mubr.bf16.mxu0 0
        %1168 = vmatmul.mubr.bf16.gmra.mrb[0].mxu0 %v1069
        %v1169 = vpop.f32.mrb[0].mxu0
        %v1170 = vadd.f32 0.0, %v1169
        %v1171 = vpop.f32.mrb[0].mxu0
        %v1172 = vpop.f32.mrb[0].mxu0
        %v1173 = vadd.f32 0.0, %v1172
        %v1174 = vpop.f32.mrb[0].mxu0
        %1175 = vmatprep.mubr.bf16.mxu0 0
        %1176 = vmatmul.mubr.bf16.gmra.mrb[0].mxu0 %v1070
        %v1177 = vpop.f32.mrb[0].mxu0
        %v1178 = vadd.f32 0.0, %v1177
        %v1179 = vpop.f32.mrb[0].mxu0
        %v1180 = vpop.f32.mrb[0].mxu0
        %v1181 = vadd.f32 0.0, %v1180
        %v1182 = vpop.f32.mrb[0].mxu0
        %1183 = vdwg.mxu0
        %v1184 = vld [vmem:[%s10] sm:$0xf]
        %v1185 = vld [vmem:[%s10 + $0x4] sm:$0xf]
        %v1186 = vld [vmem:[%s10 + $0x8] sm:$0xf]
        %v1187 = vld [vmem:[%s10 + $0xc] sm:$0xf]
        %v1188 = vld [vmem:[%s10 + $0x10] sm:$0xf]
        %v1189 = vld [vmem:[%s10 + $0x14] sm:$0xf]
        %v1190 = vld [vmem:[%s10 + $0x18] sm:$0xf]
        %v1191 = vld [vmem:[%s10 + $0x1c] sm:$0xf]
        %v1192 = vld [vmem:[%s10 + $0x20] sm:$0xf]
        %v1193 = vld [vmem:[%s10 + $0x24] sm:$0xf]
        %v1194 = vld [vmem:[%s10 + $0x28] sm:$0xf]
        %v1195 = vld [vmem:[%s10 + $0x2c] sm:$0xf]
        %v1196 = vld [vmem:[%s10 + $0x30] sm:$0xf]
        %v1197 = vld [vmem:[%s10 + $0x34] sm:$0xf]
        %v1198 = vld [vmem:[%s10 + $0x38] sm:$0xf]
        %v1199 = vld [vmem:[%s10 + $0x3c] sm:$0xf]
        %v1216 = vunpack.c.l.b16 %v1184
        %v1217 = vunpack.c.l.b16 %v1185
        %v1218 = vunpack.c.l.b16 %v1186
        %v1219 = vunpack.c.l.b16 %v1187
        %v1220 = vunpack.c.l.b16 %v1188
        %v1221 = vunpack.c.l.b16 %v1189
        %v1222 = vunpack.c.l.b16 %v1190
        %v1223 = vunpack.c.l.b16 %v1191
        %v1224 = vunpack.c.l.b16 %v1192
        %v1225 = vunpack.c.l.b16 %v1193
        %v1226 = vunpack.c.l.b16 %v1194
        %v1227 = vunpack.c.l.b16 %v1195
        %v1228 = vunpack.c.l.b16 %v1196
        %v1229 = vunpack.c.l.b16 %v1197
        %v1230 = vunpack.c.l.b16 %v1198
        %v1231 = vunpack.c.l.b16 %v1199
        %v1232 = vpack.c.b16 %v1217, %v1216
        %v1233 = vpack.c.b16 %v1219, %v1218
        %v1234 = vpack.c.b16 %v1221, %v1220
        %v1235 = vpack.c.b16 %v1223, %v1222
        %v1236 = vpack.c.b16 %v1225, %v1224
        %v1237 = vpack.c.b16 %v1227, %v1226
        %v1238 = vpack.c.b16 %v1229, %v1228
        %v1239 = vpack.c.b16 %v1231, %v1230
        %1248 = vmatprep.subr.bf16.mxu0 0
        %1249 = vmatpush1.bf16.msra.mxu0 %v1232
        %1250 = vmatprep.subr.bf16.mxu0 0
        %1251 = vmatpush1.bf16.msra.mxu0 %v1233
        %1252 = vmatprep.subr.bf16.mxu0 0
        %1253 = vmatpush1.bf16.msra.mxu0 %v1234
        %1254 = vmatprep.subr.bf16.mxu0 0
        %1255 = vmatpush1.bf16.msra.mxu0 %v1235
        %1256 = vmatprep.subr.bf16.mxu0 0
        %1257 = vmatpush1.bf16.msra.mxu0 %v1236
        %1258 = vmatprep.subr.bf16.mxu0 0
        %1259 = vmatpush1.bf16.msra.mxu0 %v1237
        %1260 = vmatprep.subr.bf16.mxu0 0
        %1261 = vmatpush1.bf16.msra.mxu0 %v1238
        %1262 = vmatprep.subr.bf16.mxu0 0
        %1263 = vmatpush1.bf16.msra.mxu0 %v1239
        %1264 = vmatprep.subr.bf16.mxu0 0
        %1265 = vmatpush1.bf16.msra.mxu0 0
        %1266 = vmatprep.subr.bf16.mxu0 0
        %1267 = vmatpush1.bf16.msra.mxu0 0
        %1268 = vmatprep.subr.bf16.mxu0 0
        %1269 = vmatpush1.bf16.msra.mxu0 0
        %1270 = vmatprep.subr.bf16.mxu0 0
        %1271 = vmatpush1.bf16.msra.mxu0 0
        %1272 = vmatprep.subr.bf16.mxu0 0
        %1273 = vmatpush1.bf16.msra.mxu0 0
        %1274 = vmatprep.subr.bf16.mxu0 0
        %1275 = vmatpush1.bf16.msra.mxu0 0
        %1276 = vmatprep.subr.bf16.mxu0 0
        %1277 = vmatpush1.bf16.msra.mxu0 0
        %1278 = vmatprep.subr.bf16.mxu0 0
        %1279 = vmatpush1.bf16.msra.mxu0 0
        %1280 = vmatprep.mubr.bf16.mxu0 0
        %1281 = vmatmul.mubr.bf16.gmra.mrb[0].mxu0 %v926
        %v1282 = vpop.f32.mrb[0].mxu0
        %v1283 = vadd.f32 0.0, %v1282
        %v1284 = vpop.f32.mrb[0].mxu0
        %v1285 = vpop.f32.mrb[0].mxu0
        %v1286 = vadd.f32 0.0, %v1285
        %v1287 = vpop.f32.mrb[0].mxu0
        %1288 = vmatprep.mubr.bf16.mxu0 0
        %1289 = vmatmul.mubr.bf16.gmra.mrb[0].mxu0 %v927
        %v1290 = vpop.f32.mrb[0].mxu0
        %v1291 = vadd.f32 0.0, %v1290
        %v1292 = vpop.f32.mrb[0].mxu0
        %v1293 = vpop.f32.mrb[0].mxu0
        %v1294 = vadd.f32 0.0, %v1293
        %v1295 = vpop.f32.mrb[0].mxu0
        %1296 = vdwg.mxu0
        %v1297 = vxor.u32 %v1283, 2147483648
        %v1298 = vxor.u32 %v1286, 2147483648
        %v1299 = vxor.u32 %v1291, 2147483648
        %v1300 = vxor.u32 %v1294, 2147483648
        %v1301 = vmul.f32 %v1297, 1.442695
        %v1302 = vpow.pop %v1301
        %v1303 = vmul.f32 %v1298, 1.442695
        %v1304 = vpow.pop %v1303
        %v1305 = vmul.f32 %v1299, 1.442695
        %v1306 = vpow.pop %v1305
        %v1307 = vmul.f32 %v1300, 1.442695
        %v1308 = vpow.pop %v1307
        %v1309 = vadd.f32 %v1302, 1.0
        %v1310 = vadd.f32 %v1304, 1.0
        %v1311 = vadd.f32 %v1306, 1.0
        %v1312 = vadd.f32 %v1308, 1.0
        %v1313 = vrcp.pop %v1309
        %v1314 = vmul.f32 1.0, %v1313
        %v1315 = vrcp.pop %v1310
        %v1316 = vmul.f32 1.0, %v1315
        %v1317 = vrcp.pop %v1311
        %v1318 = vmul.f32 1.0, %v1317
        %v1319 = vrcp.pop %v1312
        %v1320 = vmul.f32 1.0, %v1319
        %v1321 = vmul.f32 %v1283, %v1314
        %v1322 = vmul.f32 %v1286, %v1316
        %v1323 = vmul.f32 %v1291, %v1318
        %v1324 = vmul.f32 %v1294, %v1320
        %v1325 = vpack.c.bf16 %v1322, %v1321
        %v1326 = vpack.c.bf16 %v1324, %v1323
        %v1327 = vld [vmem:[%s11] sm:$0xf]
        %v1328 = vld [vmem:[%s11 + $0x4] sm:$0xf]
        %v1329 = vld [vmem:[%s11 + $0x8] sm:$0xf]
        %v1330 = vld [vmem:[%s11 + $0xc] sm:$0xf]
        %v1331 = vld [vmem:[%s11 + $0x10] sm:$0xf]
        %v1332 = vld [vmem:[%s11 + $0x14] sm:$0xf]
        %v1333 = vld [vmem:[%s11 + $0x18] sm:$0xf]
        %v1334 = vld [vmem:[%s11 + $0x1c] sm:$0xf]
        %v1335 = vld [vmem:[%s11 + $0x20] sm:$0xf]
        %v1336 = vld [vmem:[%s11 + $0x24] sm:$0xf]
        %v1337 = vld [vmem:[%s11 + $0x28] sm:$0xf]
        %v1338 = vld [vmem:[%s11 + $0x2c] sm:$0xf]
        %v1339 = vld [vmem:[%s11 + $0x30] sm:$0xf]
        %v1340 = vld [vmem:[%s11 + $0x34] sm:$0xf]
        %v1341 = vld [vmem:[%s11 + $0x38] sm:$0xf]
        %v1342 = vld [vmem:[%s11 + $0x3c] sm:$0xf]
        %v1359 = vunpack.c.l.b16 %v1327
        %v1360 = vunpack.c.l.b16 %v1328
        %v1361 = vunpack.c.l.b16 %v1329
        %v1362 = vunpack.c.l.b16 %v1330
        %v1363 = vunpack.c.l.b16 %v1331
        %v1364 = vunpack.c.l.b16 %v1332
        %v1365 = vunpack.c.l.b16 %v1333
        %v1366 = vunpack.c.l.b16 %v1334
        %v1367 = vunpack.c.l.b16 %v1335
        %v1368 = vunpack.c.l.b16 %v1336
        %v1369 = vunpack.c.l.b16 %v1337
        %v1370 = vunpack.c.l.b16 %v1338
        %v1371 = vunpack.c.l.b16 %v1339
        %v1372 = vunpack.c.l.b16 %v1340
        %v1373 = vunpack.c.l.b16 %v1341
        %v1374 = vunpack.c.l.b16 %v1342
        %v1375 = vpack.c.b16 %v1360, %v1359
        %v1376 = vpack.c.b16 %v1362, %v1361
        %v1377 = vpack.c.b16 %v1364, %v1363
        %v1378 = vpack.c.b16 %v1366, %v1365
        %v1379 = vpack.c.b16 %v1368, %v1367
        %v1380 = vpack.c.b16 %v1370, %v1369
        %v1381 = vpack.c.b16 %v1372, %v1371
        %v1382 = vpack.c.b16 %v1374, %v1373
        %1391 = vmatprep.subr.bf16.mxu0 0
        %1392 = vmatpush1.bf16.msra.mxu0 %v1375
        %1393 = vmatprep.subr.bf16.mxu0 0
        %1394 = vmatpush1.bf16.msra.mxu0 %v1376
        %1395 = vmatprep.subr.bf16.mxu0 0
        %1396 = vmatpush1.bf16.msra.mxu0 %v1377
        %1397 = vmatprep.subr.bf16.mxu0 0
        %1398 = vmatpush1.bf16.msra.mxu0 %v1378
        %1399 = vmatprep.subr.bf16.mxu0 0
        %1400 = vmatpush1.bf16.msra.mxu0 %v1379
        %1401 = vmatprep.subr.bf16.mxu0 0
        %1402 = vmatpush1.bf16.msra.mxu0 %v1380
        %1403 = vmatprep.subr.bf16.mxu0 0
        %1404 = vmatpush1.bf16.msra.mxu0 %v1381
        %1405 = vmatprep.subr.bf16.mxu0 0
        %1406 = vmatpush1.bf16.msra.mxu0 %v1382
        %1407 = vmatprep.subr.bf16.mxu0 0
        %1408 = vmatpush1.bf16.msra.mxu0 0
        %1409 = vmatprep.subr.bf16.mxu0 0
        %1410 = vmatpush1.bf16.msra.mxu0 0
        %1411 = vmatprep.subr.bf16.mxu0 0
        %1412 = vmatpush1.bf16.msra.mxu0 0
        %1413 = vmatprep.subr.bf16.mxu0 0
        %1414 = vmatpush1.bf16.msra.mxu0 0
        %1415 = vmatprep.subr.bf16.mxu0 0
        %1416 = vmatpush1.bf16.msra.mxu0 0
        %1417 = vmatprep.subr.bf16.mxu0 0
        %1418 = vmatpush1.bf16.msra.mxu0 0
        %1419 = vmatprep.subr.bf16.mxu0 0
        %1420 = vmatpush1.bf16.msra.mxu0 0
        %1421 = vmatprep.subr.bf16.mxu0 0
        %1422 = vmatpush1.bf16.msra.mxu0 0
        %1423 = vmatprep.mubr.bf16.mxu0 0
        %1424 = vmatmul.mubr.bf16.gmra.mrb[0].mxu0 %v1325
        %v1425 = vpop.f32.mrb[0].mxu0
        %v1426 = vadd.f32 0.0, %v1425
        %v1427 = vpop.f32.mrb[0].mxu0
        %v1428 = vpop.f32.mrb[0].mxu0
        %v1429 = vadd.f32 0.0, %v1428
        %v1430 = vpop.f32.mrb[0].mxu0
        %1431 = vmatprep.mubr.bf16.mxu0 0
        %1432 = vmatmul.mubr.bf16.gmra.mrb[0].mxu0 %v1326
        %v1433 = vpop.f32.mrb[0].mxu0
        %v1434 = vadd.f32 0.0, %v1433
        %v1435 = vpop.f32.mrb[0].mxu0
        %v1436 = vpop.f32.mrb[0].mxu0
        %v1437 = vadd.f32 0.0, %v1436
        %v1438 = vpop.f32.mrb[0].mxu0
        %1439 = vdwg.mxu0
        %v1440 = vld [vmem:[%s566] sm:$0xff]
        %v1441 = vld [vmem:[%s566 + $0x8] sm:$0xff]
        %v1442 = vld [vmem:[%s566 + $0x10] sm:$0xff]
        %v1443 = vld [vmem:[%s566 + $0x18] sm:$0xff]
        %1445 = vset.pattern.permute.xlu0 0
        %1446 = vperm.xlu0 %1445, %v1440
        %v1447 = vpop.permute.xlu0 %1446
        %1450 = vset.pattern.permute.xlu0 0
        %1451 = vperm.xlu0 %1450, %v1441
        %v1452 = vpop.permute.xlu0 %1451
        %1455 = vset.pattern.permute.xlu0 0
        %1456 = vperm.xlu0 %1455, %v1442
        %v1457 = vpop.permute.xlu0 %1456
        %1460 = vset.pattern.permute.xlu0 0
        %1461 = vperm.xlu0 %1460, %v1443
        %v1462 = vpop.permute.xlu0 %1461
        %v1464 = vmul.f32 %v1170, %v1447
        %v1465 = vmul.f32 %v1173, %v1452
        %v1466 = vmul.f32 %v1178, %v1457
        %v1467 = vmul.f32 %v1181, %v1462
        %v1468 = vmul.f32 %v1426, %v849
        %v1469 = vmul.f32 %v1429, %v853
        %v1470 = vmul.f32 %v1434, %v859
        %v1471 = vmul.f32 %v1437, %v863
        %v1472 = vadd.f32 %v1464, %v1468
        %v1473 = vadd.f32 %v1465, %v1469
        %v1474 = vadd.f32 %v1466, %v1470
        %v1475 = vadd.f32 %v1467, %v1471
        %v1476 = vpack.c.bf16 %v1473, %v1472
        %v1477 = vpack.c.bf16 %v1475, %v1474
        %1478 = vset.pattern.permute.xlu0 1
        %1479 = vperm.xlu0 %1478, %v1440
        %v1480 = vpop.permute.xlu0 %1479
        %1482 = vset.pattern.permute.xlu0 1
        %1483 = vperm.xlu0 %1482, %v1441
        %v1484 = vpop.permute.xlu0 %1483
        %1486 = vset.pattern.permute.xlu0 1
        %1487 = vperm.xlu0 %1486, %v1442
        %v1488 = vpop.permute.xlu0 %1487
        %1490 = vset.pattern.permute.xlu0 1
        %1491 = vperm.xlu0 %1490, %v1443
        %v1492 = vpop.permute.xlu0 %1491
        %v1494 = vmul.f32 %v1170, %v1480
        %v1495 = vmul.f32 %v1173, %v1484
        %v1496 = vmul.f32 %v1178, %v1488
        %v1497 = vmul.f32 %v1181, %v1492
        %v1498 = vmul.f32 %v1426, %v900
        %v1499 = vmul.f32 %v1429, %v904
        %v1500 = vmul.f32 %v1434, %v910
        %v1501 = vmul.f32 %v1437, %v914
        %v1502 = vadd.f32 %v1494, %v1498
        %v1503 = vadd.f32 %v1495, %v1499
        %v1504 = vadd.f32 %v1496, %v1500
        %v1505 = vadd.f32 %v1497, %v1501
        %v1506 = vpack.c.bf16 %v1503, %v1502
        %v1507 = vpack.c.bf16 %v1505, %v1504
        %1508 = vset.pattern.permute.xlu0 2
        %1509 = vperm.xlu0 %1508, %v1440
        %v1510 = vpop.permute.xlu0 %1509
        %1512 = vset.pattern.permute.xlu0 2
        %1513 = vperm.xlu0 %1512, %v1441
        %v1514 = vpop.permute.xlu0 %1513
        %1516 = vset.pattern.permute.xlu0 2
        %1517 = vperm.xlu0 %1516, %v1442
        %v1518 = vpop.permute.xlu0 %1517
        %1520 = vset.pattern.permute.xlu0 2
        %1521 = vperm.xlu0 %1520, %v1443
        %v1522 = vpop.permute.xlu0 %1521
        %v1524 = vmul.f32 %v1170, %v1510
        %v1525 = vmul.f32 %v1173, %v1514
        %v1526 = vmul.f32 %v1178, %v1518
        %v1527 = vmul.f32 %v1181, %v1522
        %v1528 = vmul.f32 %v1426, %v902
        %v1529 = vmul.f32 %v1429, %v906
        %v1530 = vmul.f32 %v1434, %v912
        %v1531 = vmul.f32 %v1437, %v916
        %v1532 = vadd.f32 %v1524, %v1528
        %v1533 = vadd.f32 %v1525, %v1529
        %v1534 = vadd.f32 %v1526, %v1530
        %v1535 = vadd.f32 %v1527, %v1531
        %v1536 = vpack.c.bf16 %v1533, %v1532
        %v1537 = vpack.c.bf16 %v1535, %v1534
        %v1538 = vld [vmem:[#allocation2] sm:$0xff]
        %v1539 = vld [vmem:[#allocation2 + $0x8] sm:$0xff]
        %v1540 = vld [vmem:[#allocation2 + $0x10] sm:$0xff]
        %v1541 = vld [vmem:[#allocation2 + $0x18] sm:$0xff]
        %v1542 = vld [vmem:[#allocation2 + $0x20] sm:$0xff]
        %v1543 = vld [vmem:[#allocation2 + $0x28] sm:$0xff]
        %v1544 = vld [vmem:[#allocation2 + $0x30] sm:$0xff]
        %v1545 = vld [vmem:[#allocation2 + $0x38] sm:$0xff]
        %1546 = vxpose.xlu0.c.b16.start [1/8] %v617, 128
        %1547 = vxpose.xlu0.c.b16.cont [2/8] %v618, 128
        %1548 = vxpose.xlu0.c.b16.cont [3/8] 0, 128
        %1549 = vxpose.xlu0.c.b16.cont [4/8] 0, 128
        %1550 = vxpose.xlu0.c.b16.cont [5/8] 0, 128
        %1551 = vxpose.xlu0.c.b16.cont [6/8] 0, 128
        %1552 = vxpose.xlu0.c.b16.cont [7/8] 0, 128
        %1553 = vxpose.xlu0.c.b16.end [8/8] 0, 128
        %v1554 = vpop.trf.xlu0
        %v1555 = vpop.trf.xlu0
        %v1556 = vpop.trf.xlu0
        %v1557 = vpop.trf.xlu0
        %v1558 = vpop.trf.xlu0
        %v1559 = vpop.trf.xlu0
        %v1560 = vpop.trf.xlu0
        %v1561 = vpop.trf.xlu0
        %vm1562 = vcmask 261120
        %v1564 = vsel %vm1562, %v1554, 0
        %1566 = vmatprep.subr.bf16.mxu0 %v1476
        %1567 = vmatpush1.bf16.msra.mxu0 %v926
        %1568 = vmatprep.subr.bf16.mxu0 %v1477
        %1569 = vmatpush1.bf16.msra.mxu0 %v927
        %1570 = vmatprep.subr.bf16.mxu0 0
        %1571 = vmatpush1.bf16.msra.mxu0 0
        %1572 = vmatprep.subr.bf16.mxu0 0
        %1573 = vmatpush1.bf16.msra.mxu0 0
        %1574 = vmatprep.subr.bf16.mxu0 0
        %1575 = vmatpush1.bf16.msra.mxu0 0
        %1576 = vmatprep.subr.bf16.mxu0 0
        %1577 = vmatpush1.bf16.msra.mxu0 0
        %1578 = vmatprep.subr.bf16.mxu0 0
        %1579 = vmatpush1.bf16.msra.mxu0 0
        %1580 = vmatprep.subr.bf16.mxu0 0
        %1581 = vmatpush1.bf16.msra.mxu0 0
        %1582 = vmatprep.subr.bf16.mxu0 0
        %1583 = vmatpush1.bf16.msra.mxu0 0
        %1584 = vmatprep.subr.bf16.mxu0 0
        %1585 = vmatpush1.bf16.msra.mxu0 0
        %1586 = vmatprep.subr.bf16.mxu0 0
        %1587 = vmatpush1.bf16.msra.mxu0 0
        %1588 = vmatprep.subr.bf16.mxu0 0
        %1589 = vmatpush1.bf16.msra.mxu0 0
        %1590 = vmatprep.subr.bf16.mxu0 0
        %1591 = vmatpush1.bf16.msra.mxu0 0
        %1592 = vmatprep.subr.bf16.mxu0 0
        %1593 = vmatpush1.bf16.msra.mxu0 0
        %1594 = vmatprep.subr.bf16.mxu0 0
        %1595 = vmatpush1.bf16.msra.mxu0 0
        %1596 = vmatprep.subr.bf16.mxu0 0
        %1597 = vmatpush1.bf16.msra.mxu0 0
        %1598 = vmatprep.mubr.bf16.mxu0 0
        %1599 = vmatmul.mubr.bf16.gmra.mrb[0].mxu0 %v1564
        %v1600 = vpop.f32.mrb[0].mxu0
        %v1601 = vadd.f32 0.0, %v1600
        %v1602 = vpop.f32.mrb[0].mxu0
        %v1603 = vadd.f32 0.0, %v1602
        %v1604 = vpop.f32.mrb[0].mxu0
        %v1605 = vadd.f32 0.0, %v1604
        %v1606 = vpop.f32.mrb[0].mxu0
        %v1607 = vadd.f32 0.0, %v1606
        %1608 = vdwg.mxu0
        %1609 = vmatprep.subr.bf16.mxu0 %v1536
        %1610 = vmatpush1.bf16.msra.mxu0 %v1506
        %1611 = vmatprep.subr.bf16.mxu0 %v1537
        %1612 = vmatpush1.bf16.msra.mxu0 %v1507
        %1613 = vmatprep.subr.bf16.mxu0 0
        %1614 = vmatpush1.bf16.msra.mxu0 0
        %1615 = vmatprep.subr.bf16.mxu0 0
        %1616 = vmatpush1.bf16.msra.mxu0 0
        %1617 = vmatprep.subr.bf16.mxu0 0
        %1618 = vmatpush1.bf16.msra.mxu0 0
        %1619 = vmatprep.subr.bf16.mxu0 0
        %1620 = vmatpush1.bf16.msra.mxu0 0
        %1621 = vmatprep.subr.bf16.mxu0 0
        %1622 = vmatpush1.bf16.msra.mxu0 0
        %1623 = vmatprep.subr.bf16.mxu0 0
        %1624 = vmatpush1.bf16.msra.mxu0 0
        %1625 = vmatprep.subr.bf16.mxu0 0
        %1626 = vmatpush1.bf16.msra.mxu0 0
        %1627 = vmatprep.subr.bf16.mxu0 0
        %1628 = vmatpush1.bf16.msra.mxu0 0
        %1629 = vmatprep.subr.bf16.mxu0 0
        %1630 = vmatpush1.bf16.msra.mxu0 0
        %1631 = vmatprep.subr.bf16.mxu0 0
        %1632 = vmatpush1.bf16.msra.mxu0 0
        %1633 = vmatprep.subr.bf16.mxu0 0
        %1634 = vmatpush1.bf16.msra.mxu0 0
        %1635 = vmatprep.subr.bf16.mxu0 0
        %1636 = vmatpush1.bf16.msra.mxu0 0
        %1637 = vmatprep.subr.bf16.mxu0 0
        %1638 = vmatpush1.bf16.msra.mxu0 0
        %1639 = vmatprep.subr.bf16.mxu0 0
        %1640 = vmatpush1.bf16.msra.mxu0 0
        %1641 = vmatprep.mubr.bf16.mxu0 0
        %1642 = vmatmul.mubr.bf16.gmra.mrb[0].mxu0 %v1564
        %v1643 = vpop.f32.mrb[0].mxu0
        %v1644 = vadd.f32 0.0, %v1643
        %v1645 = vpop.f32.mrb[0].mxu0
        %v1646 = vadd.f32 0.0, %v1645
        %v1647 = vpop.f32.mrb[0].mxu0
        %v1648 = vadd.f32 0.0, %v1647
        %v1649 = vpop.f32.mrb[0].mxu0
        %v1650 = vadd.f32 0.0, %v1649
        %1651 = vdwg.mxu0
        %v1652 = vadd.f32 %v1538, %v1601
        %v1653 = vadd.f32 %v1539, %v1603
        %v1654 = vadd.f32 %v1540, %v1644
        %v1655 = vadd.f32 %v1541, %v1646
        %v1656 = vadd.f32 %v1542, %v1605
        %v1657 = vadd.f32 %v1543, %v1607
        %v1658 = vadd.f32 %v1544, %v1648
        %v1659 = vadd.f32 %v1545, %v1650
        %1660 = vst [vmem:[#allocation2] sm:$0xff] %v1652
        %1661 = vst [vmem:[#allocation2 + $0x8] sm:$0xff] %v1653
        %1662 = vst [vmem:[#allocation2 + $0x10] sm:$0xff] %v1654
        %1663 = vst [vmem:[#allocation2 + $0x18] sm:$0xff] %v1655
        %1664 = vst [vmem:[#allocation2 + $0x20] sm:$0xff] %v1656
        %1665 = vst [vmem:[#allocation2 + $0x28] sm:$0xff] %v1657
        %1666 = vst [vmem:[#allocation2 + $0x30] sm:$0xff] %v1658
        %1667 = vst [vmem:[#allocation2 + $0x38] sm:$0xff] %v1659
        %p1668 = scmp.eq.s32.totalorder %s29, 1
        // Predicated region
        $region85: #{interaction_net.1} parent=79 // pred_check
          %p1669 = pneg %p1668
        $region86: #{interaction_net.1} parent=79 // pred_check_branch
          %1671 = sbr.rel (%p1669) target = $region88
        $region87: #{interaction_net.1} parent=79 // pred_region
          %v1672 = vld [vmem:[#allocation2] sm:$0xff]
          %v1673 = vld [vmem:[#allocation2 + $0x8] sm:$0xff]
          %v1674 = vld [vmem:[#allocation2 + $0x10] sm:$0xff]
          %v1675 = vld [vmem:[#allocation2 + $0x18] sm:$0xff]
          %v1676 = vld [vmem:[#allocation2 + $0x20] sm:$0xff]
          %v1677 = vld [vmem:[#allocation2 + $0x28] sm:$0xff]
          %v1678 = vld [vmem:[#allocation2 + $0x30] sm:$0xff]
          %v1679 = vld [vmem:[#allocation2 + $0x38] sm:$0xff]
          %v1680 = vld [vmem:[%s1] sm:$0xff]
          %v1681 = vld [vmem:[%s1 + $0x8] sm:$0xff]
          %v1682 = vadd.f32 %v1680, %v1672
          %v1683 = vadd.f32 %v1681, %v1676
          %v1684 = vld [vmem:[%s2] sm:$0xff]
          %v1685 = vld [vmem:[%s2 + $0x8] sm:$0xff]
          %v1686 = vld [vmem:[%s2 + $0x10] sm:$0xff]
          %v1687 = vld [vmem:[%s2 + $0x18] sm:$0xff]
          %v1688 = vld [vmem:[%s2 + $0x20] sm:$0xff]
          %v1689 = vld [vmem:[%s2 + $0x28] sm:$0xff]
          %v1690 = vadd.f32 %v1684, %v1673
          %v1691 = vadd.f32 %v1685, %v1674
          %v1692 = vadd.f32 %v1686, %v1675
          %v1693 = vadd.f32 %v1687, %v1677
          %v1694 = vadd.f32 %v1688, %v1678
          %v1695 = vadd.f32 %v1689, %v1679
          %1696 = vst [vmem:[%s16] sm:$0xff] %v1690
          %1697 = vst [vmem:[%s16 + $0x8] sm:$0xff] %v1691
          %1698 = vst [vmem:[%s16 + $0x10] sm:$0xff] %v1692
          %1699 = vst [vmem:[%s16 + $0x18] sm:$0xff] %v1693
          %1700 = vst [vmem:[%s16 + $0x20] sm:$0xff] %v1694
          %1701 = vst [vmem:[%s16 + $0x28] sm:$0xff] %v1695
          %v1702 = vpack.c.bf16 %v1693, %v1690
          %v1703 = vpack.c.bf16 %v1694, %v1691
          %v1704 = vpack.c.bf16 %v1695, %v1692
          %v1705 = vld [vmem:[%s12] sm:$0xf]
          %v1706 = vld [vmem:[%s12 + $0x4] sm:$0xf]
          %v1707 = vld [vmem:[%s12 + $0x8] sm:$0xf]
          %v1708 = vld [vmem:[%s12 + $0xc] sm:$0xf]
          %v1709 = vld [vmem:[%s12 + $0x10] sm:$0xf]
          %v1710 = vld [vmem:[%s12 + $0x14] sm:$0xf]
          %v1711 = vld [vmem:[%s12 + $0x18] sm:$0xf]
          %v1712 = vld [vmem:[%s12 + $0x1c] sm:$0xf]
          %v1713 = vld [vmem:[%s12 + $0x20] sm:$0xf]
          %v1714 = vld [vmem:[%s12 + $0x24] sm:$0xf]
          %v1715 = vld [vmem:[%s12 + $0x28] sm:$0xf]
          %v1716 = vld [vmem:[%s12 + $0x2c] sm:$0xf]
          %v1717 = vld [vmem:[%s12 + $0x30] sm:$0xf]
          %v1718 = vld [vmem:[%s12 + $0x34] sm:$0xf]
          %v1719 = vld [vmem:[%s12 + $0x38] sm:$0xf]
          %v1720 = vld [vmem:[%s12 + $0x3c] sm:$0xf]
          %v1737 = vunpack.c.l.b16 %v1705
          %v1738 = vunpack.c.l.b16 %v1706
          %v1739 = vunpack.c.l.b16 %v1707
          %v1740 = vunpack.c.l.b16 %v1708
          %v1741 = vunpack.c.l.b16 %v1709
          %v1742 = vunpack.c.l.b16 %v1710
          %v1743 = vunpack.c.l.b16 %v1711
          %v1744 = vunpack.c.l.b16 %v1712
          %v1745 = vunpack.c.l.b16 %v1713
          %v1746 = vunpack.c.l.b16 %v1714
          %v1747 = vunpack.c.l.b16 %v1715
          %v1748 = vunpack.c.l.b16 %v1716
          %v1749 = vunpack.c.l.b16 %v1717
          %v1750 = vunpack.c.l.b16 %v1718
          %v1751 = vunpack.c.l.b16 %v1719
          %v1752 = vunpack.c.l.b16 %v1720
          %v1753 = vpack.c.b16 %v1738, %v1737
          %v1754 = vpack.c.b16 %v1740, %v1739
          %v1755 = vpack.c.b16 %v1742, %v1741
          %v1756 = vpack.c.b16 %v1744, %v1743
          %v1757 = vpack.c.b16 %v1746, %v1745
          %v1758 = vpack.c.b16 %v1748, %v1747
          %v1759 = vpack.c.b16 %v1750, %v1749
          %v1760 = vpack.c.b16 %v1752, %v1751
          %1769 = vmatprep.subr.bf16.mxu0 0
          %1770 = vmatpush1.bf16.msra.mxu0 %v1753
          %1771 = vmatprep.subr.bf16.mxu0 0
          %1772 = vmatpush1.bf16.msra.mxu0 %v1754
          %1773 = vmatprep.subr.bf16.mxu0 0
          %1774 = vmatpush1.bf16.msra.mxu0 %v1755
          %1775 = vmatprep.subr.bf16.mxu0 0
          %1776 = vmatpush1.bf16.msra.mxu0 %v1756
          %1777 = vmatprep.subr.bf16.mxu0 0
          %1778 = vmatpush1.bf16.msra.mxu0 %v1757
          %1779 = vmatprep.subr.bf16.mxu0 0
          %1780 = vmatpush1.bf16.msra.mxu0 %v1758
          %1781 = vmatprep.subr.bf16.mxu0 0
          %1782 = vmatpush1.bf16.msra.mxu0 %v1759
          %1783 = vmatprep.subr.bf16.mxu0 0
          %1784 = vmatpush1.bf16.msra.mxu0 %v1760
          %1785 = vmatprep.subr.bf16.mxu0 0
          %1786 = vmatpush1.bf16.msra.mxu0 0
          %1787 = vmatprep.subr.bf16.mxu0 0
          %1788 = vmatpush1.bf16.msra.mxu0 0
          %1789 = vmatprep.subr.bf16.mxu0 0
          %1790 = vmatpush1.bf16.msra.mxu0 0
          %1791 = vmatprep.subr.bf16.mxu0 0
          %1792 = vmatpush1.bf16.msra.mxu0 0
          %1793 = vmatprep.subr.bf16.mxu0 0
          %1794 = vmatpush1.bf16.msra.mxu0 0
          %1795 = vmatprep.subr.bf16.mxu0 0
          %1796 = vmatpush1.bf16.msra.mxu0 0
          %1797 = vmatprep.subr.bf16.mxu0 0
          %1798 = vmatpush1.bf16.msra.mxu0 0
          %1799 = vmatprep.subr.bf16.mxu0 0
          %1800 = vmatpush1.bf16.msra.mxu0 0
          %1801 = vmatprep.mubr.bf16.mxu0 0
          %1802 = vmatmul.mubr.bf16.gmra.mrb[0].mxu0 %v1702
          %v1803 = vpop.f32.mrb[0].mxu0
          %v1804 = vadd.f32 0.0, %v1803
          %v1805 = vpop.f32.mrb[0].mxu0
          %v1806 = vpop.f32.mrb[0].mxu0
          %v1807 = vadd.f32 0.0, %v1806
          %v1808 = vpop.f32.mrb[0].mxu0
          %1809 = vdwg.mxu0
          %v1810 = vmul.f32 %v1690, %v1804
          %v1811 = vmul.f32 %v1693, %v1807
          %v1812 = vadd.f32 %v1810, 0.0
          %v1813 = vadd.f32 %v1811, 0.0
          %1814 = vmatprep.subr.bf16.mxu0 0
          %1815 = vmatpush1.bf16.msra.mxu0 %v1753
          %1816 = vmatprep.subr.bf16.mxu0 0
          %1817 = vmatpush1.bf16.msra.mxu0 %v1754
          %1818 = vmatprep.subr.bf16.mxu0 0
          %1819 = vmatpush1.bf16.msra.mxu0 %v1755
          %1820 = vmatprep.subr.bf16.mxu0 0
          %1821 = vmatpush1.bf16.msra.mxu0 %v1756
          %1822 = vmatprep.subr.bf16.mxu0 0
          %1823 = vmatpush1.bf16.msra.mxu0 %v1757
          %1824 = vmatprep.subr.bf16.mxu0 0
          %1825 = vmatpush1.bf16.msra.mxu0 %v1758
          %1826 = vmatprep.subr.bf16.mxu0 0
          %1827 = vmatpush1.bf16.msra.mxu0 %v1759
          %1828 = vmatprep.subr.bf16.mxu0 0
          %1829 = vmatpush1.bf16.msra.mxu0 %v1760
          %1830 = vmatprep.subr.bf16.mxu0 0
          %1831 = vmatpush1.bf16.msra.mxu0 0
          %1832 = vmatprep.subr.bf16.mxu0 0
          %1833 = vmatpush1.bf16.msra.mxu0 0
          %1834 = vmatprep.subr.bf16.mxu0 0
          %1835 = vmatpush1.bf16.msra.mxu0 0
          %1836 = vmatprep.subr.bf16.mxu0 0
          %1837 = vmatpush1.bf16.msra.mxu0 0
          %1838 = vmatprep.subr.bf16.mxu0 0
          %1839 = vmatpush1.bf16.msra.mxu0 0
          %1840 = vmatprep.subr.bf16.mxu0 0
          %1841 = vmatpush1.bf16.msra.mxu0 0
          %1842 = vmatprep.subr.bf16.mxu0 0
          %1843 = vmatpush1.bf16.msra.mxu0 0
          %1844 = vmatprep.subr.bf16.mxu0 0
          %1845 = vmatpush1.bf16.msra.mxu0 0
          %1846 = vmatprep.mubr.bf16.mxu0 0
          %1847 = vmatmul.mubr.bf16.gmra.mrb[0].mxu0 %v1703
          %v1848 = vpop.f32.mrb[0].mxu0
          %v1849 = vadd.f32 0.0, %v1848
          %v1850 = vpop.f32.mrb[0].mxu0
          %v1851 = vpop.f32.mrb[0].mxu0
          %v1852 = vadd.f32 0.0, %v1851
          %v1853 = vpop.f32.mrb[0].mxu0
          %1854 = vdwg.mxu0
          %v1855 = vmul.f32 %v1691, %v1849
          %v1856 = vmul.f32 %v1694, %v1852
          %v1857 = vadd.f32 %v1812, %v1855
          %v1858 = vadd.f32 %v1813, %v1856
          %1859 = vmatprep.subr.bf16.mxu0 0
          %1860 = vmatpush1.bf16.msra.mxu0 %v1753
          %1861 = vmatprep.subr.bf16.mxu0 0
          %1862 = vmatpush1.bf16.msra.mxu0 %v1754
          %1863 = vmatprep.subr.bf16.mxu0 0
          %1864 = vmatpush1.bf16.msra.mxu0 %v1755
          %1865 = vmatprep.subr.bf16.mxu0 0
          %1866 = vmatpush1.bf16.msra.mxu0 %v1756
          %1867 = vmatprep.subr.bf16.mxu0 0
          %1868 = vmatpush1.bf16.msra.mxu0 %v1757
          %1869 = vmatprep.subr.bf16.mxu0 0
          %1870 = vmatpush1.bf16.msra.mxu0 %v1758
          %1871 = vmatprep.subr.bf16.mxu0 0
          %1872 = vmatpush1.bf16.msra.mxu0 %v1759
          %1873 = vmatprep.subr.bf16.mxu0 0
          %1874 = vmatpush1.bf16.msra.mxu0 %v1760
          %1875 = vmatprep.subr.bf16.mxu0 0
          %1876 = vmatpush1.bf16.msra.mxu0 0
          %1877 = vmatprep.subr.bf16.mxu0 0
          %1878 = vmatpush1.bf16.msra.mxu0 0
          %1879 = vmatprep.subr.bf16.mxu0 0
          %1880 = vmatpush1.bf16.msra.mxu0 0
          %1881 = vmatprep.subr.bf16.mxu0 0
          %1882 = vmatpush1.bf16.msra.mxu0 0
          %1883 = vmatprep.subr.bf16.mxu0 0
          %1884 = vmatpush1.bf16.msra.mxu0 0
          %1885 = vmatprep.subr.bf16.mxu0 0
          %1886 = vmatpush1.bf16.msra.mxu0 0
          %1887 = vmatprep.subr.bf16.mxu0 0
          %1888 = vmatpush1.bf16.msra.mxu0 0
          %1889 = vmatprep.subr.bf16.mxu0 0
          %1890 = vmatpush1.bf16.msra.mxu0 0
          %1891 = vmatprep.mubr.bf16.mxu0 0
          %1892 = vmatmul.mubr.bf16.gmra.mrb[0].mxu0 %v1704
          %v1893 = vpop.f32.mrb[0].mxu0
          %v1894 = vadd.f32 0.0, %v1893
          %v1895 = vpop.f32.mrb[0].mxu0
          %v1896 = vpop.f32.mrb[0].mxu0
          %v1897 = vadd.f32 0.0, %v1896
          %v1898 = vpop.f32.mrb[0].mxu0
          %1899 = vdwg.mxu0
          %v1900 = vmul.f32 %v1692, %v1894
          %v1901 = vmul.f32 %v1695, %v1897
          %v1902 = vadd.f32 %v1857, %v1900
          %v1903 = vadd.f32 %v1858, %v1901
          %v1904 = vadd.f32 %v1682, %v1902
          %v1905 = vadd.f32 %v1683, %v1903
          %1906 = vadd.xlane.f32.xlu0 %v1904
          %v1907 = vpop.xlane.xlu0 %1906
          %1908 = vadd.xlane.f32.xlu0 %v1905
          %v1909 = vpop.xlane.xlu0 %1908
          %v1910 = vrcp.pop 128.0
          %v1911 = vmul.f32 %v1907, %v1910
          %v1912 = vmul.f32 %v1909, %v1910
          %v1913 = vsub.f32 %v1904, %v1911
          %v1914 = vsub.f32 %v1905, %v1912
          %v1915 = vmul.f32 %v1913, %v1913
          %v1916 = vmul.f32 %v1914, %v1914
          %1917 = vadd.xlane.f32.xlu0 %v1915
          %v1918 = vpop.xlane.xlu0 %1917
          %1919 = vadd.xlane.f32.xlu0 %v1916
          %v1920 = vpop.xlane.xlu0 %1919
          %v1921 = vmul.f32 %v1918, %v1910
          %v1922 = vmul.f32 %v1920, %v1910
          %v1923 = vadd.f32 %v1921, 1e-05
          %v1924 = vadd.f32 %v1922, 1e-05
          %v1925 = vrsqrt.pop %v1923
          %v1926 = vrsqrt.pop %v1924
          %v1927 = vmul.f32 %v1913, %v1925
          %v1928 = vmul.f32 %v1914, %v1926
          %v1929 = vld [vmem:[%s13] sm:$0x1]
          %v1931 = vlaneseq
          %v1932 = vshrl.u32 %v1931, 7
          %v1933 = vsub.s32 0, %v1932
          %v1934 = vrot.slane %v1929, %v1933
          %v1936 = vmul.f32 %v1927, %v1934
          %v1937 = vmul.f32 %v1928, %v1934
          %v1938 = vld [vmem:[%s14] sm:$0x1]
          %v1940 = vlaneseq
          %v1941 = vshrl.u32 %v1940, 7
          %v1942 = vsub.s32 0, %v1941
          %v1943 = vrot.slane %v1938, %v1942
          %v1945 = vadd.f32 %v1936, %v1943
          %v1946 = vadd.f32 %v1937, %v1943
          %1947 = vst [vmem:[#allocation3] sm:$0xff] %v1945
          %1948 = vst [vmem:[#allocation3 + $0x8] sm:$0xff] %v1946
        $region88: #{interaction_net.1} parent=79 // pred_fallthru
          _
        // Predicated region
        $region89: #{interaction_net.1} parent=79 // pred_check
          %p1949 = pneg %p377
        $region90: #{interaction_net.1} parent=79 // pred_check_branch
          %1951 = sbr.rel (%p1949) target = $region92
        $region91: #{interaction_net.1} parent=79 // pred_region
          %s1953 = ssub.s32 256, 256
          %1954 = vsyncadd [#allocation4], %s1953
          %s1955 = sshll.u32 [#allocation3], 4
          %s1956 = int_to_ptr.vmem [resolvable:$true] %s1955
          %1961 = dma.vmem_to_hbm [thread:$0]  %s1956, 256, %s15, [#allocation4], 128, 128, 8
        $region92: #{interaction_net.1} parent=79 // pred_fallthru
          _
        // Predicated region
        $region93: #{interaction_net.1} parent=79 // pred_check
          %p1962 = pneg %p398
        $region94: #{interaction_net.1} parent=79 // pred_check_branch
          %1964 = sbr.rel (%p1962) target = $region96
        $region95: #{interaction_net.1} parent=79 // pred_region
          _
        $region96: #{interaction_net.1} parent=79 // pred_fallthru
          _
        // Predicated region
        $region97: #{interaction_net.1} parent=79 // pred_check
          %p1965 = pneg %p377
        $region98: #{interaction_net.1} parent=79 // pred_check_branch
          %1967 = sbr.rel (%p1965) target = $region100
        $region99: #{interaction_net.1} parent=79 // pred_region
          %1968 = dma.done [#allocation4], 256
        $region100: #{interaction_net.1} parent=79 // pred_fallthru
          _
        // Predicated region
        $region101: #{interaction_net.1} parent=79 // pred_check
          %p1969 = pneg %p398
        $region102: #{interaction_net.1} parent=79 // pred_check_branch
          %1971 = sbr.rel (%p1969) target = $region104
        $region103: #{interaction_net.1} parent=79 // pred_region
          _
        $region104: #{interaction_net.1} parent=79 // pred_fallthru
          _
      $region80: #{interaction_net.1} parent=5 // pred_fallthru
        _
      %p1972 = scmp.le.s32.totalorder 2, %s24
      // Predicated region
      $region105: #{interaction_net.1} parent=5 // pred_check
        %p1973 = pneg %p1972
      $region106: #{interaction_net.1} parent=5 // pred_check_branch
        %1975 = sbr.rel (%p1973) target = $region108
      $region107: #{interaction_net.1} parent=5 // pred_region
        %s1976 = ssub.s32 %s24, 2
      $region108: #{interaction_net.1} parent=5 // pred_fallthru
        _
    $region6: #{interaction_net.1} parent=1 // loop_footer
      %s28 = sadd.s32 1, %s24
    $region7: #{interaction_net.1} parent=1 // loop_footer_branch
      %23 = sbr.rel target = $region3
    $region8: #{interaction_net.1} parent=1 // loop_exit
      _
    %1977 = vsyncpa [#allocation4], 1
    %s1978 = scalar_lea.sflag [#allocation4], 1
    %1979 = vsyncpa %s1978, 1

</llo_original>
